<compile_context>
chip_gen: v5e
topology: v5e:2x2
jax: 0.10.0
libtpu: 0.0.40
codegen_flags: <defaults>
</compile_context>

<pallas_src>
import functools

import jax
import jax.numpy as jnp
import numpy as np
from jax.experimental import pallas as pl
from jax.experimental.pallas import tpu as pltpu


def _decoder_step_kernel(
    we_ref,      # (B, E)             f32  embedded word (dropout_in = identity in eval)
    ctx_ref,     # (B, C)             f32  context, time dim squeezed (C = ctx*H)
    h0_ref,      # (L, B, H)          f32
    c0_ref,      # (L, B, H)          f32
    w0e_ref,     # (E, 4H)            bf16 layer-0 W_ih[:, :E]^T, gate order (i,f,o,g)
    w0c_ref,     # (C, 4H)            bf16 layer-0 W_ih[:, E:]^T
    wih_ref,     # (max(L-1,1),H,4H)  bf16 layers>=1 W_ih^T
    whh_ref,     # (L, H, 4H)         bf16 W_hh^T
    b_ref,       # (L, 4H)            f32  b_ih + b_hh (pre-summed)
    wo_ref,      # (H, TV)            bf16 out.weight^T, current V-tile
    bo_ref,      # (1, TV)            f32  current V-tile (padding lanes = -1e30)
    # outputs
    logits_ref,  # (B, TV)            f32  unnormalized logits, current V-tile
    lse_ref,     # (B, 1)             f32  logsumexp over the full (padded) vocab
    hout_ref,    # (L, B, H)          f32
    cout_ref,    # (L, B, H)          f32
    # scratch
    x_scr,       # (B, H)             bf16 top-layer hidden, persists across V tiles
    m_scr,       # (B, 1)             f32  running max
    l_scr,       # (B, 1)             f32  running sum-exp
):
    f32 = jnp.float32
    cdt = wo_ref.dtype                       # MXU input dtype (bf16)
    L, B, H = h0_ref.shape
    j = pl.program_id(0)

    # ---- LSTM stack: runs once (first V tile), result cached in VMEM scratch ----
    @pl.when(j == 0)
    def _run_lstm():
        we = we_ref[...].astype(cdt)
        ctx = ctx_ref[...].astype(cdt)
        x = None
        for l in range(L):
            h_prev = h0_ref[l, :, :]
            c_prev = c0_ref[l, :, :]
            if l == 0:
                # full_input = [word_embedded, context]: split-weight dots share one f32 acc
                acc = jnp.dot(we, w0e_ref[...], preferred_element_type=f32)
                acc = acc + jnp.dot(ctx, w0c_ref[...], preferred_element_type=f32)
            else:
                acc = jnp.dot(x, wih_ref[l - 1], preferred_element_type=f32)
            gates = (
                acc
                + jnp.dot(h_prev.astype(cdt), whh_ref[l], preferred_element_type=f32)
                + b_ref[l : l + 1, :]
            )                                               # (B, 4H) f32
            # gate order (i, f, o, g): one sigmoid over 3H lanes + one tanh over H lanes
            sig = jax.nn.sigmoid(gates[:, : 3 * H])
            g_g = jnp.tanh(gates[:, 3 * H :])
            i_g = sig[:, :H]
            f_g = sig[:, H : 2 * H]
            o_g = sig[:, 2 * H : 3 * H]

            c_new = f_g * c_prev + i_g * g_g
            h_new = o_g * jnp.tanh(c_new)
            hout_ref[l, :, :] = h_new
            cout_ref[l, :, :] = c_new
            # nn.LSTM here is built with default dropout=0 -> no inter-layer dropout.
            x = h_new.astype(cdt)
        x_scr[...] = x
        m_scr[...] = jnp.full((B, 1), -1e30, f32)
        l_scr[...] = jnp.zeros((B, 1), f32)

    # ---- V-tiled output projection with online logsumexp ----
    x = x_scr[...]
    logits = jnp.dot(x, wo_ref[...], preferred_element_type=f32) + bo_ref[...]   # (B, TV)
    logits_ref[...] = logits

    m_prev = m_scr[...]
    m_new = jnp.maximum(m_prev, jnp.max(logits, axis=-1, keepdims=True))
    l_scr[...] = (l_scr[...] * jnp.exp(m_prev - m_new)
                  + jnp.sum(jnp.exp(logits - m_new), axis=-1, keepdims=True))
    m_scr[...] = m_new

    @pl.when(j == pl.num_programs(0) - 1)
    def _finalize():
        lse_ref[...] = m_scr[...] + jnp.log(l_scr[...])


def _ifgo_to_ifog(w):
    """Permute the last (4H) axis from PyTorch gate order (i,f,g,o) to (i,f,o,g)."""
    i, f, g, o = jnp.split(w, 4, axis=-1)
    return jnp.concatenate([i, f, o, g], axis=-1)


def init_params(key, vocab_size, embedding_size, num_layers=2, bidirectional=False,
                weight_dtype=jnp.bfloat16):
    """Parameters stored KERNEL-READY: pre-transposed, gate-reordered (i,f,o,g),
    bias-fused, vocab padded to a lane-dense 128 multiple, bf16.
    (A real PyTorch checkpoint would go through the same transpose/permute/pad.)"""
    E = embedding_size
    H = E                                                    # hidden_size = embedding_size
    ctx_factor = 1 + int(bool(bidirectional) or num_layers == 2)
    D0 = E + H * ctx_factor                                  # LSTM layer-0 input size
    V = vocab_size
    L = num_layers
    ks = jax.random.split(key, 4 * L + 3)

    def unif(k, shape, bound):
        return jax.random.uniform(k, shape, jnp.float32, -bound, bound)

    emb = unif(ks[0], (V, E), 0.1).at[0].set(0.0)            # padding_idx = 0

    b = 1.0 / float(np.sqrt(H))
    w_ih0 = unif(ks[1], (4 * H, D0), b)                      # layer-0 input->hidden (i,f,g,o)
    w0e_t = _ifgo_to_ifog(w_ih0[:, :E].T)                    # (E, 4H)
    w0c_t = _ifgo_to_ifog(w_ih0[:, E:].T)                    # (ctx*H, 4H)

    wih_rest, whh, b_lstm = [], [], []
    kidx = 2
    for l in range(L):
        if l > 0:
            wih_rest.append(_ifgo_to_ifog(unif(ks[kidx], (4 * H, H), b).T)); kidx += 1
        whh.append(_ifgo_to_ifog(unif(ks[kidx], (4 * H, H), b).T)); kidx += 1
        b_ih = unif(ks[kidx], (4 * H,), b); kidx += 1
        b_hh = unif(ks[kidx], (4 * H,), b); kidx += 1
        b_lstm.append(_ifgo_to_ifog(b_ih + b_hh))            # pre-summed, reordered bias
    if not wih_rest:                                         # dummy (unused) when L == 1
        wih_rest.append(jnp.zeros((H, 4 * H), jnp.float32))

    w_out = unif(ks[kidx], (V, H), b); kidx += 1
    b_out = unif(ks[kidx], (V,), b)

    # pad vocab to a lane-dense multiple of 128 (tiles of up to 2048 lanes)
    v_tile = min(2048, ((V + 127) // 128) * 128)
    v_pad = ((V + v_tile - 1) // v_tile) * v_tile
    wo_pad = jnp.zeros((H, v_pad), jnp.float32).at[:, :V].set(w_out.T)
    bo_pad = jnp.full((1, v_pad), -1e30, jnp.float32).at[0, :V].set(b_out)

    wd = weight_dtype
    return dict(
        embedding=emb,                                       # (V, E)      f32 (unpadded)
        w0e_t=w0e_t.astype(wd),                              # (E, 4H)     bf16
        w0c_t=w0c_t.astype(wd),                              # (ctx*H, 4H) bf16
        wih_t=jnp.stack(wih_rest).astype(wd),                # (L-1, H,4H) bf16
        whh_t=jnp.stack(whh).astype(wd),                     # (L, H, 4H)  bf16
        b_lstm=jnp.stack(b_lstm),                            # (L, 4H)     f32
        wo_t=wo_pad.astype(wd),                              # (H, Vpad)   bf16
        b_out=bo_pad,                                        # (1, Vpad)   f32
    )


def _pick_v_tile(v_pad):
    for t in (2048, 1024, 512, 256, 128):
        if v_pad % t == 0:
            return t
    return v_pad


@jax.jit
def decoder_rnn_forward(params, word_input, hidden, context, context2=None):
    # context2 is accepted for API parity but unused (as in the PyTorch module).
    del context2
    h0, c0 = hidden
    L, B, H = h0.shape
    V = params["embedding"].shape[0]                         # real vocab size
    Vp = params["b_out"].shape[-1]                           # padded (lane-dense) vocab
    TV = _pick_v_tile(Vp)
    nV = Vp // TV
    E = params["embedding"].shape[1]
    C = context.shape[-1]
    G = 4 * H
    Lw = params["wih_t"].shape[0]

    # glue: embedding gather (eval-mode dropout_in = identity); weights need NO per-step work.
    # TODO(synk): fuse the gather into the kernel (scalar-prefetch token ids + row DMA from
    # HBM) and fuse T autoregressive steps into one pallas_call (grid=(T,), weights
    # VMEM-resident, h/c in scratch) -- this wrapper keeps the module's single-step API.
    we = params["embedding"][word_input[0]]                  # (B, E)
    ctx = context[0]                                         # (B, C)

    # generation-aware VMEM budget: resident LSTM weights/states + double-buffered V tiles,
    # 2x headroom, capped below physical limits of all generations (v7x: 64 MiB).
    resident = ((B * E + B * C + 4 * L * B * H + B * H) * 4
                + (E * G + C * G + Lw * H * G + L * H * G) * 2 + L * G * 4)
    tiled = 2 * (H * TV * 2 + TV * 4 + B * TV * 4)
    vmem_limit = int(min(100 * 2 ** 20, max(32 * 2 ** 20, 2 * (resident + tiled))))

    grid_spec = pltpu.PrefetchScalarGridSpec(
        num_scalar_prefetch=0,
        grid=(nV,),
        in_specs=[
            pl.BlockSpec((B, E), lambda j: (0, 0)),          # we        (resident)
            pl.BlockSpec((B, C), lambda j: (0, 0)),          # ctx       (resident)
            pl.BlockSpec((L, B, H), lambda j: (0, 0, 0)),    # h0        (resident)
            pl.BlockSpec((L, B, H), lambda j: (0, 0, 0)),    # c0        (resident)
            pl.BlockSpec((E, G), lambda j: (0, 0)),          # w0e_t     (resident)
            pl.BlockSpec((C, G), lambda j: (0, 0)),          # w0c_t     (resident)
            pl.BlockSpec((Lw, H, G), lambda j: (0, 0, 0)),   # wih_t     (resident)
            pl.BlockSpec((L, H, G), lambda j: (0, 0, 0)),    # whh_t     (resident)
            pl.BlockSpec((L, G), lambda j: (0, 0)),          # b_lstm    (resident)
            pl.BlockSpec((H, TV), lambda j: (0, j)),         # wo_t      (V-tiled, pipelined)
            pl.BlockSpec((1, TV), lambda j: (0, j)),         # b_out     (V-tiled)
        ],
        out_specs=(
            pl.BlockSpec((B, TV), lambda j: (0, j)),         # unnormalized logits
            pl.BlockSpec((B, 1), lambda j: (0, 0)),          # lse accumulator
            pl.BlockSpec((L, B, H), lambda j: (0, 0, 0)),    # h_out
            pl.BlockSpec((L, B, H), lambda j: (0, 0, 0)),    # c_out
        ),
        scratch_shapes=[
            pltpu.VMEM((B, H), params["wo_t"].dtype),        # top-layer hidden (bf16)
            pltpu.VMEM((B, 1), jnp.float32),                 # running max
            pltpu.VMEM((B, 1), jnp.float32),                 # running sum-exp
        ],
    )
    out_shape = (
        jax.ShapeDtypeStruct((B, Vp), jnp.float32),
        jax.ShapeDtypeStruct((B, 1), jnp.float32),
        jax.ShapeDtypeStruct((L, B, H), jnp.float32),
        jax.ShapeDtypeStruct((L, B, H), jnp.float32),
    )
    logits, lse, hout, cout = pl.pallas_call(
        _decoder_step_kernel,
        out_shape=out_shape,
        grid_spec=grid_spec,
        input_output_aliases={2: 2, 3: 3},                   # h0 -> h_out, c0 -> c_out
        compiler_params=pltpu.CompilerParams(
            dimension_semantics=("arbitrary",),              # lse accumulates across V tiles
            vmem_limit_bytes=vmem_limit,
        ),
    )(
        we, ctx, h0, c0,
        params["w0e_t"], params["w0c_t"], params["wih_t"], params["whh_t"],
        params["b_lstm"], params["wo_t"], params["b_out"],
    )

    # normalize pass (tiny (B,V) elementwise); padded vocab columns are sliced off.
    # TODO(synk): on v7x split the V grid across the 2 TensorCores (per-core partial (m,l)
    # combined in a tiny second step) to double wo_t streaming bandwidth.
    logp = logits[:, :V] - lse
    return logp, (hout, cout), []


def _reference_forward(params, word_input, hidden, context):
    """Pure-JAX reference with identical math (bf16 MXU inputs, f32 accumulation,
    (i,f,o,g) gate layout)."""
    f32 = jnp.float32
    h0, c0 = hidden
    L, _, H = h0.shape
    V = params["embedding"].shape[0]
    cdt = params["wo_t"].dtype
    we = params["embedding"][word_input[0]].astype(cdt)
    ctx = context[0].astype(cdt)
    hs, cs = [], []
    x = None
    for l in range(L):
        if l == 0:
            acc = (jnp.dot(we, params["w0e_t"], preferred_element_type=f32)
                   + jnp.dot(ctx, params["w0c_t"], preferred_element_type=f32))
        else:
            acc = jnp.dot(x, params["wih_t"][l - 1], preferred_element_type=f32)
        gates = (acc
                 + jnp.dot(h0[l].astype(cdt), params["whh_t"][l], preferred_element_type=f32)
                 + params["b_lstm"][l])
        i = jax.nn.sigmoid(gates[:, :H]); f = jax.nn.sigmoid(gates[:, H:2 * H])
        o = jax.nn.sigmoid(gates[:, 2 * H:3 * H]); g = jnp.tanh(gates[:, 3 * H:])
        c_new = f * c0[l] + i * g
        h_new = o * jnp.tanh(c_new)
        hs.append(h_new); cs.append(c_new)
        x = h_new.astype(cdt)
    logits = (jnp.dot(x, params["wo_t"], preferred_element_type=f32)
              + params["b_out"])[:, :V]
    return jax.nn.log_softmax(logits, axis=-1), (jnp.stack(hs), jnp.stack(cs))


if __name__ == "__main__":
    B, E, V, L = 2, 32, 300, 2        # V=300 -> Vpad=384, 3 vocab tiles (exercises online lse)
    H = E
    CTX = 2                           # 1 + (bidirectional or num_layers == 2)

    key = jax.random.PRNGKey(0)
    kp, kw, kc, kh, kcell = jax.random.split(key, 5)

    params = init_params(kp, vocab_size=V, embedding_size=E, num_layers=L)
    word_input = jax.random.randint(kw, (1, B), 0, V, dtype=jnp.int32)
    context = jax.random.normal(kc, (1, B, CTX * H), jnp.float32)
    h0 = jax.random.normal(kh, (L, B, H), jnp.float32)
    c0 = jax.random.normal(kcell, (L, B, H), jnp.float32)

    logp, (h_out, c_out), extra = decoder_rnn_forward(
        params, word_input, (h0, c0), context, None)
    jax.block_until_ready((logp, h_out, c_out))

    # shape + normalization checks
    assert logp.shape == (B, V)
    assert h_out.shape == (L, B, H) and c_out.shape == (L, B, H)
    assert extra == []
    assert np.allclose(np.exp(np.asarray(logp)).sum(-1), 1.0, atol=1e-4)

    # numerical check against pure-JAX reference (same bf16 weights / f32 accumulation)
    ref_logp, (ref_h, ref_c) = _reference_forward(params, word_input, (h0, c0), context)
    assert np.allclose(np.asarray(logp), np.asarray(ref_logp), atol=2e-2, rtol=0)
    assert np.allclose(np.asarray(h_out), np.asarray(ref_h), atol=2e-2, rtol=0)
    assert np.allclose(np.asarray(c_out), np.asarray(ref_c), atol=2e-2, rtol=0)

    print("KERNEL_OK")
</pallas_src>

<mosaic_0001>
module attributes {stable_mosaic.version = 11 : i64} {
  func.func @_decoder_step_kernel(%arg0: i32, %arg1: memref<2x32xf32, #tpu.memory_space<vmem>>, %arg2: memref<2x64xf32, #tpu.memory_space<vmem>>, %arg3: memref<2x2x32xf32, #tpu.memory_space<vmem>>, %arg4: memref<2x2x32xf32, #tpu.memory_space<vmem>>, %arg5: memref<32x128xbf16, #tpu.memory_space<vmem>>, %arg6: memref<64x128xbf16, #tpu.memory_space<vmem>>, %arg7: memref<1x32x128xbf16, #tpu.memory_space<vmem>>, %arg8: memref<2x32x128xbf16, #tpu.memory_space<vmem>>, %arg9: memref<2x128xf32, #tpu.memory_space<vmem>>, %arg10: memref<32x128xbf16, #tpu.memory_space<vmem>>, %arg11: memref<1x128xf32, #tpu.memory_space<vmem>>, %arg12: memref<2x128xf32, #tpu.memory_space<vmem>>, %arg13: memref<2x1xf32, #tpu.memory_space<vmem>>, %arg14: memref<2x2x32xf32, #tpu.memory_space<vmem>>, %arg15: memref<2x2x32xf32, #tpu.memory_space<vmem>>, %arg16: memref<2x32xbf16, #tpu.memory_space<vmem>>, %arg17: memref<2x1xf32, #tpu.memory_space<vmem>>, %arg18: memref<2x1xf32, #tpu.memory_space<vmem>>) attributes {dimension_semantics = [#tpu.dimension_semantics<arbitrary>], iteration_bounds = array<i64: 3>, scalar_prefetch = 0 : i64, scratch_operands = 3 : i64, tpu.core_type = #tpu.core_type<tc>, window_params = [{pipeline_mode = #tpu.pipeline_mode<synchronous>, transform_indices = @transform_0, window_bounds = array<i64: 2, 32>}, {pipeline_mode = #tpu.pipeline_mode<synchronous>, transform_indices = @transform_1, window_bounds = array<i64: 2, 64>}, {pipeline_mode = #tpu.pipeline_mode<synchronous>, transform_indices = @transform_2, window_bounds = array<i64: 2, 2, 32>}, {pipeline_mode = #tpu.pipeline_mode<synchronous>, transform_indices = @transform_3, window_bounds = array<i64: 2, 2, 32>}, {pipeline_mode = #tpu.pipeline_mode<synchronous>, transform_indices = @transform_4, window_bounds = array<i64: 32, 128>}, {pipeline_mode = #tpu.pipeline_mode<synchronous>, transform_indices = @transform_5, window_bounds = array<i64: 64, 128>}, {pipeline_mode = #tpu.pipeline_mode<synchronous>, transform_indices = @transform_6, window_bounds = array<i64: 1, 32, 128>}, {pipeline_mode = #tpu.pipeline_mode<synchronous>, transform_indices = @transform_7, window_bounds = array<i64: 2, 32, 128>}, {pipeline_mode = #tpu.pipeline_mode<synchronous>, transform_indices = @transform_8, window_bounds = array<i64: 2, 128>}, {transform_indices = @transform_9, window_bounds = array<i64: 32, 128>}, {transform_indices = @transform_10, window_bounds = array<i64: 1, 128>}, {transform_indices = @transform_11, window_bounds = array<i64: 2, 128>}, {pipeline_mode = #tpu.pipeline_mode<synchronous>, transform_indices = @transform_12, window_bounds = array<i64: 2, 1>}, {pipeline_mode = #tpu.pipeline_mode<synchronous>, transform_indices = @transform_13, window_bounds = array<i64: 2, 2, 32>}, {pipeline_mode = #tpu.pipeline_mode<synchronous>, transform_indices = @transform_14, window_bounds = array<i64: 2, 2, 32>}]} {
    %c0_i32 = arith.constant 0 : i32
    %0 = arith.cmpi eq, %arg0, %c0_i32 : i32
    %1 = arith.extui %0 : i1 to i32
    %c0_i32_0 = arith.constant 0 : i32
    %2 = arith.cmpi ne, %1, %c0_i32_0 : i32
    scf.if %2 {
      %c0_19 = arith.constant 0 : index
      %c0_20 = arith.constant 0 : index
      %29 = vector.load %arg1[%c0_19, %c0_20] : memref<2x32xf32, #tpu.memory_space<vmem>>, vector<2x32xf32>
      %30 = arith.truncf %29 : vector<2x32xf32> to vector<2x32xbf16>
      %c0_21 = arith.constant 0 : index
      %c0_22 = arith.constant 0 : index
      %31 = vector.load %arg2[%c0_21, %c0_22] : memref<2x64xf32, #tpu.memory_space<vmem>>, vector<2x64xf32>
      %32 = arith.truncf %31 : vector<2x64xf32> to vector<2x64xbf16>
      %c0_23 = arith.constant 0 : index
      %c0_24 = arith.constant 0 : index
      %c0_25 = arith.constant 0 : index
      %33 = vector.load %arg3[%c0_23, %c0_24, %c0_25] : memref<2x2x32xf32, #tpu.memory_space<vmem>>, vector<1x2x32xf32>
      %34 = vector.shape_cast %33 : vector<1x2x32xf32> to vector<2x32xf32>
      %c0_26 = arith.constant 0 : index
      %c0_27 = arith.constant 0 : index
      %c0_28 = arith.constant 0 : index
      %35 = vector.load %arg4[%c0_26, %c0_27, %c0_28] : memref<2x2x32xf32, #tpu.memory_space<vmem>>, vector<1x2x32xf32>
      %36 = vector.shape_cast %35 : vector<1x2x32xf32> to vector<2x32xf32>
      %c0_29 = arith.constant 0 : index
      %c0_30 = arith.constant 0 : index
      %37 = vector.load %arg5[%c0_29, %c0_30] : memref<32x128xbf16, #tpu.memory_space<vmem>>, vector<32x128xbf16>
      %cst_31 = arith.constant dense<0.000000e+00> : vector<2x128xf32>
      %38 = tpu.matmul %30, %37, %cst_31 {dimension_numbers = #tpu.dot_dimension_numbers<[1], [0], [0], [1], [0, 0, 1, 1], [], []>} : vector<2x32xbf16>, vector<32x128xbf16>, vector<2x128xf32> -> vector<2x128xf32>
      %c0_32 = arith.constant 0 : index
      %c0_33 = arith.constant 0 : index
      %39 = vector.load %arg6[%c0_32, %c0_33] : memref<64x128xbf16, #tpu.memory_space<vmem>>, vector<64x128xbf16>
      %cst_34 = arith.constant dense<0.000000e+00> : vector<2x128xf32>
      %40 = tpu.matmul %32, %39, %cst_34 {dimension_numbers = #tpu.dot_dimension_numbers<[1], [0], [0], [1], [0, 0, 1, 1], [], []>} : vector<2x64xbf16>, vector<64x128xbf16>, vector<2x128xf32> -> vector<2x128xf32>
      %41 = arith.addf %38, %40 : vector<2x128xf32>
      %42 = arith.truncf %34 : vector<2x32xf32> to vector<2x32xbf16>
      %c0_35 = arith.constant 0 : index
      %c0_36 = arith.constant 0 : index
      %c0_37 = arith.constant 0 : index
      %43 = vector.load %arg8[%c0_35, %c0_36, %c0_37] : memref<2x32x128xbf16, #tpu.memory_space<vmem>>, vector<1x32x128xbf16>
      %44 = vector.shape_cast %43 : vector<1x32x128xbf16> to vector<32x128xbf16>
      %cst_38 = arith.constant dense<0.000000e+00> : vector<2x128xf32>
      %45 = tpu.matmul %42, %44, %cst_38 {dimension_numbers = #tpu.dot_dimension_numbers<[1], [0], [0], [1], [0, 0, 1, 1], [], []>} : vector<2x32xbf16>, vector<32x128xbf16>, vector<2x128xf32> -> vector<2x128xf32>
      %46 = arith.addf %41, %45 : vector<2x128xf32>
      %c0_39 = arith.constant 0 : index
      %c0_40 = arith.constant 0 : index
      %47 = vector.load %arg9[%c0_39, %c0_40] : memref<2x128xf32, #tpu.memory_space<vmem>>, vector<1x128xf32>
      %48 = vector.broadcast %47 : vector<1x128xf32> to vector<2x128xf32>
      %49 = arith.addf %46, %48 : vector<2x128xf32>
      %50 = vector.extract_strided_slice %49 {offsets = [0, 0], sizes = [2, 96], strides = [1, 1]} : vector<2x128xf32> to vector<2x96xf32>
      %51 = arith.negf %50 : vector<2x96xf32>
      %52 = math.exp %51 : vector<2x96xf32>
      %cst_41 = arith.constant 1.000000e+00 : f32
      %53 = vector.broadcast %cst_41 : f32 to vector<2x96xf32>
      %54 = arith.addf %53, %52 : vector<2x96xf32>
      %55 = arith.divf %53, %54 : vector<2x96xf32>
      %56 = vector.extract_strided_slice %49 {offsets = [0, 96], sizes = [2, 32], strides = [1, 1]} : vector<2x128xf32> to vector<2x32xf32>
      %57 = math.tanh %56 : vector<2x32xf32>
      %58 = vector.extract_strided_slice %55 {offsets = [0, 0], sizes = [2, 32], strides = [1, 1]} : vector<2x96xf32> to vector<2x32xf32>
      %59 = vector.extract_strided_slice %55 {offsets = [0, 32], sizes = [2, 32], strides = [1, 1]} : vector<2x96xf32> to vector<2x32xf32>
      %60 = vector.extract_strided_slice %55 {offsets = [0, 64], sizes = [2, 32], strides = [1, 1]} : vector<2x96xf32> to vector<2x32xf32>
      %61 = arith.mulf %59, %36 : vector<2x32xf32>
      %62 = arith.mulf %58, %57 : vector<2x32xf32>
      %63 = arith.addf %61, %62 : vector<2x32xf32>
      %64 = math.tanh %63 : vector<2x32xf32>
      %65 = arith.mulf %60, %64 : vector<2x32xf32>
      %c0_42 = arith.constant 0 : index
      %c0_43 = arith.constant 0 : index
      %c0_44 = arith.constant 0 : index
      %66 = vector.load %arg14[%c0_42, %c0_43, %c0_44] : memref<2x2x32xf32, #tpu.memory_space<vmem>>, vector<1x2x32xf32>
      %67 = vector.shape_cast %66 : vector<1x2x32xf32> to vector<2x32xf32>
      %68 = vector.shape_cast %65 : vector<2x32xf32> to vector<1x2x32xf32>
      tpu.vector_store %arg14[%c0_42, %c0_43, %c0_44], %68 {strides = array<i32>} : memref<2x2x32xf32, #tpu.memory_space<vmem>>, vector<1x2x32xf32>,
      %c0_45 = arith.constant 0 : index
      %c0_46 = arith.constant 0 : index
      %c0_47 = arith.constant 0 : index
      %69 = vector.load %arg15[%c0_45, %c0_46, %c0_47] : memref<2x2x32xf32, #tpu.memory_space<vmem>>, vector<1x2x32xf32>
      %70 = vector.shape_cast %69 : vector<1x2x32xf32> to vector<2x32xf32>
      %71 = vector.shape_cast %63 : vector<2x32xf32> to vector<1x2x32xf32>
      tpu.vector_store %arg15[%c0_45, %c0_46, %c0_47], %71 {strides = array<i32>} : memref<2x2x32xf32, #tpu.memory_space<vmem>>, vector<1x2x32xf32>,
      %72 = arith.truncf %65 : vector<2x32xf32> to vector<2x32xbf16>
      %c1 = arith.constant 1 : index
      %c0_48 = arith.constant 0 : index
      %c0_49 = arith.constant 0 : index
      %73 = vector.load %arg3[%c1, %c0_48, %c0_49] : memref<2x2x32xf32, #tpu.memory_space<vmem>>, vector<1x2x32xf32>
      %74 = vector.shape_cast %73 : vector<1x2x32xf32> to vector<2x32xf32>
      %c1_50 = arith.constant 1 : index
      %c0_51 = arith.constant 0 : index
      %c0_52 = arith.constant 0 : index
      %75 = vector.load %arg4[%c1_50, %c0_51, %c0_52] : memref<2x2x32xf32, #tpu.memory_space<vmem>>, vector<1x2x32xf32>
      %76 = vector.shape_cast %75 : vector<1x2x32xf32> to vector<2x32xf32>
      %c0_53 = arith.constant 0 : index
      %c0_54 = arith.constant 0 : index
      %c0_55 = arith.constant 0 : index
      %77 = vector.load %arg7[%c0_53, %c0_54, %c0_55] : memref<1x32x128xbf16, #tpu.memory_space<vmem>>, vector<1x32x128xbf16>
      %78 = vector.shape_cast %77 : vector<1x32x128xbf16> to vector<32x128xbf16>
      %cst_56 = arith.constant dense<0.000000e+00> : vector<2x128xf32>
      %79 = tpu.matmul %72, %78, %cst_56 {dimension_numbers = #tpu.dot_dimension_numbers<[1], [0], [0], [1], [0, 0, 1, 1], [], []>} : vector<2x32xbf16>, vector<32x128xbf16>, vector<2x128xf32> -> vector<2x128xf32>
      %80 = arith.truncf %74 : vector<2x32xf32> to vector<2x32xbf16>
      %c1_57 = arith.constant 1 : index
      %c0_58 = arith.constant 0 : index
      %c0_59 = arith.constant 0 : index
      %81 = vector.load %arg8[%c1_57, %c0_58, %c0_59] : memref<2x32x128xbf16, #tpu.memory_space<vmem>>, vector<1x32x128xbf16>
      %82 = vector.shape_cast %81 : vector<1x32x128xbf16> to vector<32x128xbf16>
      %cst_60 = arith.constant dense<0.000000e+00> : vector<2x128xf32>
      %83 = tpu.matmul %80, %82, %cst_60 {dimension_numbers = #tpu.dot_dimension_numbers<[1], [0], [0], [1], [0, 0, 1, 1], [], []>} : vector<2x32xbf16>, vector<32x128xbf16>, vector<2x128xf32> -> vector<2x128xf32>
      %84 = arith.addf %79, %83 : vector<2x128xf32>
      %c1_61 = arith.constant 1 : index
      %c0_62 = arith.constant 0 : index
      %85 = vector.load %arg9[%c1_61, %c0_62] : memref<2x128xf32, #tpu.memory_space<vmem>>, vector<1x128xf32>
      %86 = vector.broadcast %85 : vector<1x128xf32> to vector<2x128xf32>
      %87 = arith.addf %84, %86 : vector<2x128xf32>
      %88 = vector.extract_strided_slice %87 {offsets = [0, 0], sizes = [2, 96], strides = [1, 1]} : vector<2x128xf32> to vector<2x96xf32>
      %89 = arith.negf %88 : vector<2x96xf32>
      %90 = math.exp %89 : vector<2x96xf32>
      %cst_63 = arith.constant 1.000000e+00 : f32
      %91 = vector.broadcast %cst_63 : f32 to vector<2x96xf32>
      %92 = arith.addf %91, %90 : vector<2x96xf32>
      %93 = arith.divf %91, %92 : vector<2x96xf32>
      %94 = vector.extract_strided_slice %87 {offsets = [0, 96], sizes = [2, 32], strides = [1, 1]} : vector<2x128xf32> to vector<2x32xf32>
      %95 = math.tanh %94 : vector<2x32xf32>
      %96 = vector.extract_strided_slice %93 {offsets = [0, 0], sizes = [2, 32], strides = [1, 1]} : vector<2x96xf32> to vector<2x32xf32>
      %97 = vector.extract_strided_slice %93 {offsets = [0, 32], sizes = [2, 32], strides = [1, 1]} : vector<2x96xf32> to vector<2x32xf32>
      %98 = vector.extract_strided_slice %93 {offsets = [0, 64], sizes = [2, 32], strides = [1, 1]} : vector<2x96xf32> to vector<2x32xf32>
      %99 = arith.mulf %97, %76 : vector<2x32xf32>
      %100 = arith.mulf %96, %95 : vector<2x32xf32>
      %101 = arith.addf %99, %100 : vector<2x32xf32>
      %102 = math.tanh %101 : vector<2x32xf32>
      %103 = arith.mulf %98, %102 : vector<2x32xf32>
      %c1_64 = arith.constant 1 : index
      %c0_65 = arith.constant 0 : index
      %c0_66 = arith.constant 0 : index
      %104 = vector.load %arg14[%c1_64, %c0_65, %c0_66] : memref<2x2x32xf32, #tpu.memory_space<vmem>>, vector<1x2x32xf32>
      %105 = vector.shape_cast %104 : vector<1x2x32xf32> to vector<2x32xf32>
      %106 = vector.shape_cast %103 : vector<2x32xf32> to vector<1x2x32xf32>
      tpu.vector_store %arg14[%c1_64, %c0_65, %c0_66], %106 {strides = array<i32>} : memref<2x2x32xf32, #tpu.memory_space<vmem>>, vector<1x2x32xf32>,
      %c1_67 = arith.constant 1 : index
      %c0_68 = arith.constant 0 : index
      %c0_69 = arith.constant 0 : index
      %107 = vector.load %arg15[%c1_67, %c0_68, %c0_69] : memref<2x2x32xf32, #tpu.memory_space<vmem>>, vector<1x2x32xf32>
      %108 = vector.shape_cast %107 : vector<1x2x32xf32> to vector<2x32xf32>
      %109 = vector.shape_cast %101 : vector<2x32xf32> to vector<1x2x32xf32>
      tpu.vector_store %arg15[%c1_67, %c0_68, %c0_69], %109 {strides = array<i32>} : memref<2x2x32xf32, #tpu.memory_space<vmem>>, vector<1x2x32xf32>,
      %110 = arith.truncf %103 : vector<2x32xf32> to vector<2x32xbf16>
      %c0_70 = arith.constant 0 : index
      %c0_71 = arith.constant 0 : index
      %111 = vector.load %arg16[%c0_70, %c0_71] : memref<2x32xbf16, #tpu.memory_space<vmem>>, vector<2x32xbf16>
      tpu.vector_store %arg16[%c0_70, %c0_71], %110 {strides = array<i32>} : memref<2x32xbf16, #tpu.memory_space<vmem>>, vector<2x32xbf16>,
      %cst_72 = arith.constant -1.000000e+30 : f32
      %112 = vector.broadcast %cst_72 : f32 to vector<2x1xf32>
      %c0_73 = arith.constant 0 : index
      %c0_74 = arith.constant 0 : index
      %113 = vector.load %arg17[%c0_73, %c0_74] : memref<2x1xf32, #tpu.memory_space<vmem>>, vector<2x1xf32>
      tpu.vector_store %arg17[%c0_73, %c0_74], %112 {strides = array<i32>} : memref<2x1xf32, #tpu.memory_space<vmem>>, vector<2x1xf32>,
      %cst_75 = arith.constant 0.000000e+00 : f32
      %114 = vector.broadcast %cst_75 : f32 to vector<2x1xf32>
      %c0_76 = arith.constant 0 : index
      %c0_77 = arith.constant 0 : index
      %115 = vector.load %arg18[%c0_76, %c0_77] : memref<2x1xf32, #tpu.memory_space<vmem>>, vector<2x1xf32>
      tpu.vector_store %arg18[%c0_76, %c0_77], %114 {strides = array<i32>} : memref<2x1xf32, #tpu.memory_space<vmem>>, vector<2x1xf32>,
    } else {
    }
    %c0 = arith.constant 0 : index
    %c0_1 = arith.constant 0 : index
    %3 = vector.load %arg16[%c0, %c0_1] : memref<2x32xbf16, #tpu.memory_space<vmem>>, vector<2x32xbf16>
    %c0_2 = arith.constant 0 : index
    %c0_3 = arith.constant 0 : index
    %4 = vector.load %arg10[%c0_2, %c0_3] : memref<32x128xbf16, #tpu.memory_space<vmem>>, vector<32x128xbf16>
    %cst = arith.constant dense<0.000000e+00> : vector<2x128xf32>
    %5 = tpu.matmul %3, %4, %cst {dimension_numbers = #tpu.dot_dimension_numbers<[1], [0], [0], [1], [0, 0, 1, 1], [], []>} : vector<2x32xbf16>, vector<32x128xbf16>, vector<2x128xf32> -> vector<2x128xf32>
    %c0_4 = arith.constant 0 : index
    %c0_5 = arith.constant 0 : index
    %6 = vector.load %arg11[%c0_4, %c0_5] : memref<1x128xf32, #tpu.memory_space<vmem>>, vector<1x128xf32>
    %7 = vector.broadcast %6 : vector<1x128xf32> to vector<2x128xf32>
    %8 = arith.addf %5, %7 : vector<2x128xf32>
    %c0_6 = arith.constant 0 : index
    %c0_7 = arith.constant 0 : index
    %9 = vector.load %arg12[%c0_6, %c0_7] : memref<2x128xf32, #tpu.memory_space<vmem>>, vector<2x128xf32>
    tpu.vector_store %arg12[%c0_6, %c0_7], %8 {strides = array<i32>} : memref<2x128xf32, #tpu.memory_space<vmem>>, vector<2x128xf32>,
    %c0_8 = arith.constant 0 : index
    %c0_9 = arith.constant 0 : index
    %10 = vector.load %arg17[%c0_8, %c0_9] : memref<2x1xf32, #tpu.memory_space<vmem>>, vector<2x1xf32>
    %cst_10 = arith.constant dense<0xFF800000> : vector<2xf32>
    %11 = vector.multi_reduction <maximumf>, %8, %cst_10 [1] : vector<2x128xf32> to vector<2xf32>
    %12 = vector.shape_cast %11 : vector<2xf32> to vector<2x1xf32>
    %13 = arith.maximumf %10, %12 : vector<2x1xf32>
    %c0_11 = arith.constant 0 : index
    %c0_12 = arith.constant 0 : index
    %14 = vector.load %arg18[%c0_11, %c0_12] : memref<2x1xf32, #tpu.memory_space<vmem>>, vector<2x1xf32>
    %15 = arith.subf %10, %13 : vector<2x1xf32>
    %16 = math.exp %15 : vector<2x1xf32>
    %17 = arith.mulf %14, %16 : vector<2x1xf32>
    %18 = vector.broadcast %13 : vector<2x1xf32> to vector<2x128xf32>
    %19 = arith.subf %8, %18 : vector<2x128xf32>
    %20 = math.exp %19 : vector<2x128xf32>
    %cst_13 = arith.constant dense<0.000000e+00> : vector<2xf32>
    %21 = vector.multi_reduction <add>, %20, %cst_13 [1] : vector<2x128xf32> to vector<2xf32>
    %22 = vector.shape_cast %21 : vector<2xf32> to vector<2x1xf32>
    %23 = arith.addf %17, %22 : vector<2x1xf32>
    %c0_14 = arith.constant 0 : index
    %c0_15 = arith.constant 0 : index
    %24 = vector.load %arg18[%c0_14, %c0_15] : memref<2x1xf32, #tpu.memory_space<vmem>>, vector<2x1xf32>
    tpu.vector_store %arg18[%c0_14, %c0_15], %23 {strides = array<i32>} : memref<2x1xf32, #tpu.memory_space<vmem>>, vector<2x1xf32>,
    %c0_16 = arith.constant 0 : index
    %c0_17 = arith.constant 0 : index
    %25 = vector.load %arg17[%c0_16, %c0_17] : memref<2x1xf32, #tpu.memory_space<vmem>>, vector<2x1xf32>
    tpu.vector_store %arg17[%c0_16, %c0_17], %13 {strides = array<i32>} : memref<2x1xf32, #tpu.memory_space<vmem>>, vector<2x1xf32>,
    %c2_i32 = arith.constant 2 : i32
    %26 = arith.cmpi eq, %arg0, %c2_i32 : i32
    %27 = arith.extui %26 : i1 to i32
    %c0_i32_18 = arith.constant 0 : i32
    %28 = arith.cmpi ne, %27, %c0_i32_18 : i32
    scf.if %28 {
      %c0_19 = arith.constant 0 : index
      %c0_20 = arith.constant 0 : index
      %29 = vector.load %arg17[%c0_19, %c0_20] : memref<2x1xf32, #tpu.memory_space<vmem>>, vector<2x1xf32>
      %c0_21 = arith.constant 0 : index
      %c0_22 = arith.constant 0 : index
      %30 = vector.load %arg18[%c0_21, %c0_22] : memref<2x1xf32, #tpu.memory_space<vmem>>, vector<2x1xf32>
      %31 = math.log %30 : vector<2x1xf32>
      %32 = arith.addf %29, %31 : vector<2x1xf32>
      %c0_23 = arith.constant 0 : index
      %c0_24 = arith.constant 0 : index
      %33 = vector.load %arg13[%c0_23, %c0_24] : memref<2x1xf32, #tpu.memory_space<vmem>>, vector<2x1xf32>
      tpu.vector_store %arg13[%c0_23, %c0_24], %32 {strides = array<i32>} : memref<2x1xf32, #tpu.memory_space<vmem>>, vector<2x1xf32>,
    } else {
    }
    return
  }
  func.func @transform_0(%arg0: i32) -> (i32, i32) {
    %c0_i32 = arith.constant 0 : i32
    %c0_i32_0 = arith.constant 0 : i32
    %c0_i32_1 = arith.constant 0 : i32
    return %c0_i32, %c0_i32_0 : i32, i32
  }
  func.func @transform_1(%arg0: i32) -> (i32, i32) {
    %c0_i32 = arith.constant 0 : i32
    %c0_i32_0 = arith.constant 0 : i32
    %c0_i32_1 = arith.constant 0 : i32
    return %c0_i32, %c0_i32_0 : i32, i32
  }
  func.func @transform_2(%arg0: i32) -> (i32, i32, i32) {
    %c0_i32 = arith.constant 0 : i32
    %c0_i32_0 = arith.constant 0 : i32
    %c0_i32_1 = arith.constant 0 : i32
    %c0_i32_2 = arith.constant 0 : i32
    return %c0_i32, %c0_i32_0, %c0_i32_1 : i32, i32, i32
  }
  func.func @transform_3(%arg0: i32) -> (i32, i32, i32) {
    %c0_i32 = arith.constant 0 : i32
    %c0_i32_0 = arith.constant 0 : i32
    %c0_i32_1 = arith.constant 0 : i32
    %c0_i32_2 = arith.constant 0 : i32
    return %c0_i32, %c0_i32_0, %c0_i32_1 : i32, i32, i32
  }
  func.func @transform_4(%arg0: i32) -> (i32, i32) {
    %c0_i32 = arith.constant 0 : i32
    %c0_i32_0 = arith.constant 0 : i32
    %c0_i32_1 = arith.constant 0 : i32
    return %c0_i32, %c0_i32_0 : i32, i32
  }
  func.func @transform_5(%arg0: i32) -> (i32, i32) {
    %c0_i32 = arith.constant 0 : i32
    %c0_i32_0 = arith.constant 0 : i32
    %c0_i32_1 = arith.constant 0 : i32
    return %c0_i32, %c0_i32_0 : i32, i32
  }
  func.func @transform_6(%arg0: i32) -> (i32, i32, i32) {
    %c0_i32 = arith.constant 0 : i32
    %c0_i32_0 = arith.constant 0 : i32
    %c0_i32_1 = arith.constant 0 : i32
    %c0_i32_2 = arith.constant 0 : i32
    return %c0_i32, %c0_i32_0, %c0_i32_1 : i32, i32, i32
  }
  func.func @transform_7(%arg0: i32) -> (i32, i32, i32) {
    %c0_i32 = arith.constant 0 : i32
    %c0_i32_0 = arith.constant 0 : i32
    %c0_i32_1 = arith.constant 0 : i32
    %c0_i32_2 = arith.constant 0 : i32
    return %c0_i32, %c0_i32_0, %c0_i32_1 : i32, i32, i32
  }
  func.func @transform_8(%arg0: i32) -> (i32, i32) {
    %c0_i32 = arith.constant 0 : i32
    %c0_i32_0 = arith.constant 0 : i32
    %c0_i32_1 = arith.constant 0 : i32
    return %c0_i32, %c0_i32_0 : i32, i32
  }
  func.func @transform_9(%arg0: i32) -> (i32, i32) {
    %c0_i32 = arith.constant 0 : i32
    %c0_i32_0 = arith.constant 0 : i32
    return %c0_i32, %arg0 : i32, i32
  }
  func.func @transform_10(%arg0: i32) -> (i32, i32) {
    %c0_i32 = arith.constant 0 : i32
    %c0_i32_0 = arith.constant 0 : i32
    return %c0_i32, %arg0 : i32, i32
  }
  func.func @transform_11(%arg0: i32) -> (i32, i32) {
    %c0_i32 = arith.constant 0 : i32
    %c0_i32_0 = arith.constant 0 : i32
    return %c0_i32, %arg0 : i32, i32
  }
  func.func @transform_12(%arg0: i32) -> (i32, i32) {
    %c0_i32 = arith.constant 0 : i32
    %c0_i32_0 = arith.constant 0 : i32
    %c0_i32_1 = arith.constant 0 : i32
    return %c0_i32, %c0_i32_0 : i32, i32
  }
  func.func @transform_13(%arg0: i32) -> (i32, i32, i32) {
    %c0_i32 = arith.constant 0 : i32
    %c0_i32_0 = arith.constant 0 : i32
    %c0_i32_1 = arith.constant 0 : i32
    %c0_i32_2 = arith.constant 0 : i32
    return %c0_i32, %c0_i32_0, %c0_i32_1 : i32, i32, i32
  }
  func.func @transform_14(%arg0: i32) -> (i32, i32, i32) {
    %c0_i32 = arith.constant 0 : i32
    %c0_i32_0 = arith.constant 0 : i32
    %c0_i32_1 = arith.constant 0 : i32
    %c0_i32_2 = arith.constant 0 : i32
    return %c0_i32, %c0_i32_0, %c0_i32_1 : i32, i32, i32
  }
}

</mosaic_0001>

<llo_original>
// kernel: decoder_rnn_forward.1
$region0: #{decoder_rnn_forward.1}
  #allocation0 [shape = 'u32[]', space=smem, size = 0x4, offset = 0x4, fixed_abs, tag = 'smem constant byte address 0x4 - core index']
  #allocation1 [shape = 'u32[72,128]{1,0:T(1,128)}', space=vmem, size = 0x9000, scoped, tag = 'internal scratch']
  #allocation2 [shape = 'bf16[2,32]{1,0:T(2,128)(2,1)}', space=vmem, size = 0x200, scoped, tag = 'scratch operand']
  #allocation3 [shape = 'f32[2,1]{1,0:T(2,128)}', space=vmem, size = 0x400, scoped, tag = 'scratch operand']
  #allocation4 [shape = 'f32[2,1]{1,0:T(2,128)}', space=vmem, size = 0x400, scoped, tag = 'scratch operand']
  %s0 = inlined_call_operand.vmem [shape: f32[2,32], index: 0, kind: input, shape index: {}]
  %s1 = inlined_call_operand.vmem [shape: f32[2,64], index: 1, kind: input, shape index: {}]
  %s2 = inlined_call_operand.vmem [shape: f32[2,2,32], index: 2, kind: input, shape index: {}, may-alias: {2,13}]
  %s3 = inlined_call_operand.vmem [shape: f32[2,2,32], index: 3, kind: input, shape index: {}, may-alias: {3,14}]
  %s4 = inlined_call_operand.vmem [shape: bf16[32,128], index: 4, kind: input, shape index: {}]
  %s5 = inlined_call_operand.vmem [shape: bf16[64,128], index: 5, kind: input, shape index: {}]
  %s6 = inlined_call_operand.vmem [shape: bf16[1,32,128], index: 6, kind: input, shape index: {}]
  %s7 = inlined_call_operand.vmem [shape: bf16[2,32,128], index: 7, kind: input, shape index: {}]
  %s8 = inlined_call_operand.vmem [shape: f32[2,128], index: 8, kind: input, shape index: {}]
  %s9 = inlined_call_operand.vmem [shape: bf16[32,384], index: 9, kind: input, shape index: {}]
  %s10 = inlined_call_operand.vmem [shape: f32[1,384], index: 10, kind: input, shape index: {}]
  %s11 = inlined_call_operand.vmem [shape: f32[2,384], index: 11, kind: output, shape index: {0}]
  %s12 = inlined_call_operand.vmem [shape: f32[2,1], index: 12, kind: output, shape index: {1}]
  %s13 = inlined_call_operand.vmem [shape: f32[2,2,32], index: 13, kind: output, shape index: {2}, may-alias: {2,13}]
  %s14 = inlined_call_operand.vmem [shape: f32[2,2,32], index: 14, kind: output, shape index: {3}, may-alias: {3,14}]
  %15 = xla_tuple %s11, %s12, %s13, %s14
  %s16 = sld [smem:[#allocation0]]
  $region150: #{decoder_rnn_forward.1} parent=0
    _
  %s18 = ssub.s32 1, %s16
  %s19 = scalar_select 0, %s18, %s16
  $region1: #{decoder_rnn_forward.1} parent=0
    #allocation5 [shape = 'u8[16384]{0}', space=vmem, size = 0x4000, scoped, tag = 'input window, operand 9']
    loop: start=0, step=1, limit=5
    $region2: #{decoder_rnn_forward.1} parent=1 // loop_pre_header
      _
    $region3: #{decoder_rnn_forward.1} parent=1 // loop_header
      %s21 = sphi 0, %s25
      %p22 = scmp.ge.s32.totalorder %s21, 5
      %s29 = sphi 0, %s29
      %s31 = sphi 0, %s29
      %s32 = sphi 0, %s31
      %s46 = sphi 0, %s32
      %s50 = sphi 0, %s50
      %s52 = sphi 0, %s50
      %s53 = sphi 0, %s52
      %s67 = sphi 0, %s53
      %s71 = sphi 0, %s71
      %s73 = sphi 0, %s71
      %s74 = sphi 0, %s73
      %s88 = sphi 0, %s74
      %s92 = sphi 0, %s92
      %s94 = sphi 0, %s92
      %s95 = sphi 0, %s94
      %s109 = sphi 0, %s95
      %s113 = sphi 0, %s113
      %s115 = sphi 0, %s113
      %s116 = sphi 0, %s115
      %s130 = sphi 0, %s116
      %s134 = sphi 0, %s134
      %s136 = sphi 0, %s134
      %s137 = sphi 0, %s136
      %s151 = sphi 0, %s137
      %s155 = sphi 0, %s155
      %s157 = sphi 0, %s155
      %s158 = sphi 0, %s157
      %s172 = sphi 0, %s158
      %s176 = sphi 0, %s176
      %s178 = sphi 0, %s176
      %s179 = sphi 0, %s178
      %s193 = sphi 0, %s179
      %s197 = sphi 0, %s197
      %s199 = sphi 0, %s197
      %s200 = sphi 0, %s199
      %s214 = sphi 0, %s200
      %s220 = sphi 0, %s222
      %s223 = sphi 0, %s220
      %s224 = sphi 0, %s223
      %s240 = sphi 0, %s224
      %s246 = sphi 0, %s248
      %s249 = sphi 0, %s246
      %s250 = sphi 0, %s249
      %s266 = sphi 0, %s250
      %s272 = sphi 0, %s274
      %s275 = sphi 0, %s272
      %s276 = sphi 0, %s275
      %s292 = sphi 0, %s276
      %s296 = sphi 0, %s296
      %s298 = sphi 0, %s296
      %s299 = sphi 0, %s298
      %s313 = sphi 0, %s299
      %s317 = sphi 0, %s317
      %s319 = sphi 0, %s317
      %s320 = sphi 0, %s319
      %s334 = sphi 0, %s320
      %s338 = sphi 0, %s338
      %s340 = sphi 0, %s338
      %s341 = sphi 0, %s340
      %s355 = sphi 0, %s341
    $region4: #{decoder_rnn_forward.1} parent=1 // loop_header_branch
      %24 = sbr.rel (%p22) target = $region8
    $region5: #{decoder_rnn_forward.1} parent=1 // loop_body
      %s26 = ssub.s32 %s21, 1
      %s27 = ssub.s32 %s21, 2
      %s28 = sadd.s32 %s21, 1
      %s30 = sadd.s32 %s29, 1
      %p33 = scmp.eq.s32.totalorder %s21, 2
      %p34 = scmp.ne.s32.totalorder %s29, %s31
      %p35 = scmp.eq.s32.totalorder %s21, 0
      %p36 = por %p34, %p35
      %p37 = scmp.ne.s32.totalorder %s29, %s31
      %p38 = scmp.eq.s32.totalorder %s26, 2
      %p39 = por %p37, %p38
      %p40 = scmp.ne.s32.totalorder %s31, %s32
      %p41 = scmp.eq.s32.totalorder %s26, 0
      %p42 = por %p40, %p41
      %p43 = scmp.ne.s32.totalorder %s31, %s32
      %p44 = scmp.eq.s32.totalorder %s27, 2
      %p45 = por %p43, %p44
      %p47 = scmp.ne.s32.totalorder %s32, %s46
      %p48 = scmp.eq.s32.totalorder %s27, 0
      %p49 = por %p47, %p48
      %s51 = sadd.s32 %s50, 1
      %p54 = scmp.eq.s32.totalorder %s21, 2
      %p55 = scmp.ne.s32.totalorder %s50, %s52
      %p56 = scmp.eq.s32.totalorder %s21, 0
      %p57 = por %p55, %p56
      %p58 = scmp.ne.s32.totalorder %s50, %s52
      %p59 = scmp.eq.s32.totalorder %s26, 2
      %p60 = por %p58, %p59
      %p61 = scmp.ne.s32.totalorder %s52, %s53
      %p62 = scmp.eq.s32.totalorder %s26, 0
      %p63 = por %p61, %p62
      %p64 = scmp.ne.s32.totalorder %s52, %s53
      %p65 = scmp.eq.s32.totalorder %s27, 2
      %p66 = por %p64, %p65
      %p68 = scmp.ne.s32.totalorder %s53, %s67
      %p69 = scmp.eq.s32.totalorder %s27, 0
      %p70 = por %p68, %p69
      %s72 = sadd.s32 %s71, 1
      %p75 = scmp.eq.s32.totalorder %s21, 2
      %p76 = scmp.ne.s32.totalorder %s71, %s73
      %p77 = scmp.eq.s32.totalorder %s21, 0
      %p78 = por %p76, %p77
      %p79 = scmp.ne.s32.totalorder %s71, %s73
      %p80 = scmp.eq.s32.totalorder %s26, 2
      %p81 = por %p79, %p80
      %p82 = scmp.ne.s32.totalorder %s73, %s74
      %p83 = scmp.eq.s32.totalorder %s26, 0
      %p84 = por %p82, %p83
      %p85 = scmp.ne.s32.totalorder %s73, %s74
      %p86 = scmp.eq.s32.totalorder %s27, 2
      %p87 = por %p85, %p86
      %p89 = scmp.ne.s32.totalorder %s74, %s88
      %p90 = scmp.eq.s32.totalorder %s27, 0
      %p91 = por %p89, %p90
      %s93 = sadd.s32 %s92, 1
      %p96 = scmp.eq.s32.totalorder %s21, 2
      %p97 = scmp.ne.s32.totalorder %s92, %s94
      %p98 = scmp.eq.s32.totalorder %s21, 0
      %p99 = por %p97, %p98
      %p100 = scmp.ne.s32.totalorder %s92, %s94
      %p101 = scmp.eq.s32.totalorder %s26, 2
      %p102 = por %p100, %p101
      %p103 = scmp.ne.s32.totalorder %s94, %s95
      %p104 = scmp.eq.s32.totalorder %s26, 0
      %p105 = por %p103, %p104
      %p106 = scmp.ne.s32.totalorder %s94, %s95
      %p107 = scmp.eq.s32.totalorder %s27, 2
      %p108 = por %p106, %p107
      %p110 = scmp.ne.s32.totalorder %s95, %s109
      %p111 = scmp.eq.s32.totalorder %s27, 0
      %p112 = por %p110, %p111
      %s114 = sadd.s32 %s113, 1
      %p117 = scmp.eq.s32.totalorder %s21, 2
      %p118 = scmp.ne.s32.totalorder %s113, %s115
      %p119 = scmp.eq.s32.totalorder %s21, 0
      %p120 = por %p118, %p119
      %p121 = scmp.ne.s32.totalorder %s113, %s115
      %p122 = scmp.eq.s32.totalorder %s26, 2
      %p123 = por %p121, %p122
      %p124 = scmp.ne.s32.totalorder %s115, %s116
      %p125 = scmp.eq.s32.totalorder %s26, 0
      %p126 = por %p124, %p125
      %p127 = scmp.ne.s32.totalorder %s115, %s116
      %p128 = scmp.eq.s32.totalorder %s27, 2
      %p129 = por %p127, %p128
      %p131 = scmp.ne.s32.totalorder %s116, %s130
      %p132 = scmp.eq.s32.totalorder %s27, 0
      %p133 = por %p131, %p132
      %s135 = sadd.s32 %s134, 1
      %p138 = scmp.eq.s32.totalorder %s21, 2
      %p139 = scmp.ne.s32.totalorder %s134, %s136
      %p140 = scmp.eq.s32.totalorder %s21, 0
      %p141 = por %p139, %p140
      %p142 = scmp.ne.s32.totalorder %s134, %s136
      %p143 = scmp.eq.s32.totalorder %s26, 2
      %p144 = por %p142, %p143
      %p145 = scmp.ne.s32.totalorder %s136, %s137
      %p146 = scmp.eq.s32.totalorder %s26, 0
      %p147 = por %p145, %p146
      %p148 = scmp.ne.s32.totalorder %s136, %s137
      %p149 = scmp.eq.s32.totalorder %s27, 2
      %p150 = por %p148, %p149
      %p152 = scmp.ne.s32.totalorder %s137, %s151
      %p153 = scmp.eq.s32.totalorder %s27, 0
      %p154 = por %p152, %p153
      %s156 = sadd.s32 %s155, 1
      %p159 = scmp.eq.s32.totalorder %s21, 2
      %p160 = scmp.ne.s32.totalorder %s155, %s157
      %p161 = scmp.eq.s32.totalorder %s21, 0
      %p162 = por %p160, %p161
      %p163 = scmp.ne.s32.totalorder %s155, %s157
      %p164 = scmp.eq.s32.totalorder %s26, 2
      %p165 = por %p163, %p164
      %p166 = scmp.ne.s32.totalorder %s157, %s158
      %p167 = scmp.eq.s32.totalorder %s26, 0
      %p168 = por %p166, %p167
      %p169 = scmp.ne.s32.totalorder %s157, %s158
      %p170 = scmp.eq.s32.totalorder %s27, 2
      %p171 = por %p169, %p170
      %p173 = scmp.ne.s32.totalorder %s158, %s172
      %p174 = scmp.eq.s32.totalorder %s27, 0
      %p175 = por %p173, %p174
      %s177 = sadd.s32 %s176, 1
      %p180 = scmp.eq.s32.totalorder %s21, 2
      %p181 = scmp.ne.s32.totalorder %s176, %s178
      %p182 = scmp.eq.s32.totalorder %s21, 0
      %p183 = por %p181, %p182
      %p184 = scmp.ne.s32.totalorder %s176, %s178
      %p185 = scmp.eq.s32.totalorder %s26, 2
      %p186 = por %p184, %p185
      %p187 = scmp.ne.s32.totalorder %s178, %s179
      %p188 = scmp.eq.s32.totalorder %s26, 0
      %p189 = por %p187, %p188
      %p190 = scmp.ne.s32.totalorder %s178, %s179
      %p191 = scmp.eq.s32.totalorder %s27, 2
      %p192 = por %p190, %p191
      %p194 = scmp.ne.s32.totalorder %s179, %s193
      %p195 = scmp.eq.s32.totalorder %s27, 0
      %p196 = por %p194, %p195
      %s198 = sadd.s32 %s197, 1
      %p201 = scmp.eq.s32.totalorder %s21, 2
      %p202 = scmp.ne.s32.totalorder %s197, %s199
      %p203 = scmp.eq.s32.totalorder %s21, 0
      %p204 = por %p202, %p203
      %p205 = scmp.ne.s32.totalorder %s197, %s199
      %p206 = scmp.eq.s32.totalorder %s26, 2
      %p207 = por %p205, %p206
      %p208 = scmp.ne.s32.totalorder %s199, %s200
      %p209 = scmp.eq.s32.totalorder %s26, 0
      %p210 = por %p208, %p209
      %p211 = scmp.ne.s32.totalorder %s199, %s200
      %p212 = scmp.eq.s32.totalorder %s27, 2
      %p213 = por %p211, %p212
      %p215 = scmp.ne.s32.totalorder %s200, %s214
      %p216 = scmp.eq.s32.totalorder %s27, 0
      %p217 = por %p215, %p216
      %s218 = ssub.s32 %s21, %s28
      %p219 = scmp.eq.s32.totalorder %s218, 0
      %s221 = sadd.s32 %s220, 1
      %s222 = scalar_select %p219, %s220, %s221
      %p225 = pneg %p219
      %p226 = scmp.eq.s32.totalorder %s21, 2
      %p227 = por %p225, %p226
      %p228 = scmp.ne.s32.totalorder %s220, %s223
      %p229 = scmp.eq.s32.totalorder %s21, 0
      %p230 = por %p228, %p229
      %p231 = scmp.ne.s32.totalorder %s220, %s223
      %p232 = scmp.eq.s32.totalorder %s26, 2
      %p233 = por %p231, %p232
      %p234 = scmp.ne.s32.totalorder %s223, %s224
      %p235 = scmp.eq.s32.totalorder %s26, 0
      %p236 = por %p234, %p235
      %p237 = scmp.ne.s32.totalorder %s223, %s224
      %p238 = scmp.eq.s32.totalorder %s27, 2
      %p239 = por %p237, %p238
      %p241 = scmp.ne.s32.totalorder %s224, %s240
      %p242 = scmp.eq.s32.totalorder %s27, 0
      %p243 = por %p241, %p242
      %s244 = ssub.s32 %s21, %s28
      %p245 = scmp.eq.s32.totalorder %s244, 0
      %s247 = sadd.s32 %s246, 1
      %s248 = scalar_select %p245, %s246, %s247
      %p251 = pneg %p245
      %p252 = scmp.eq.s32.totalorder %s21, 2
      %p253 = por %p251, %p252
      %p254 = scmp.ne.s32.totalorder %s246, %s249
      %p255 = scmp.eq.s32.totalorder %s21, 0
      %p256 = por %p254, %p255
      %p257 = scmp.ne.s32.totalorder %s246, %s249
      %p258 = scmp.eq.s32.totalorder %s26, 2
      %p259 = por %p257, %p258
      %p260 = scmp.ne.s32.totalorder %s249, %s250
      %p261 = scmp.eq.s32.totalorder %s26, 0
      %p262 = por %p260, %p261
      %p263 = scmp.ne.s32.totalorder %s249, %s250
      %p264 = scmp.eq.s32.totalorder %s27, 2
      %p265 = por %p263, %p264
      %p267 = scmp.ne.s32.totalorder %s250, %s266
      %p268 = scmp.eq.s32.totalorder %s27, 0
      %p269 = por %p267, %p268
      %s270 = ssub.s32 %s21, %s28
      %p271 = scmp.eq.s32.totalorder %s270, 0
      %s273 = sadd.s32 %s272, 1
      %s274 = scalar_select %p271, %s272, %s273
      %p277 = pneg %p271
      %p278 = scmp.eq.s32.totalorder %s21, 2
      %p279 = por %p277, %p278
      %p280 = scmp.ne.s32.totalorder %s272, %s275
      %p281 = scmp.eq.s32.totalorder %s21, 0
      %p282 = por %p280, %p281
      %p283 = scmp.ne.s32.totalorder %s272, %s275
      %p284 = scmp.eq.s32.totalorder %s26, 2
      %p285 = por %p283, %p284
      %p286 = scmp.ne.s32.totalorder %s275, %s276
      %p287 = scmp.eq.s32.totalorder %s26, 0
      %p288 = por %p286, %p287
      %p289 = scmp.ne.s32.totalorder %s275, %s276
      %p290 = scmp.eq.s32.totalorder %s27, 2
      %p291 = por %p289, %p290
      %p293 = scmp.ne.s32.totalorder %s276, %s292
      %p294 = scmp.eq.s32.totalorder %s27, 0
      %p295 = por %p293, %p294
      %s297 = sadd.s32 %s296, 1
      %p300 = scmp.eq.s32.totalorder %s21, 2
      %p301 = scmp.ne.s32.totalorder %s296, %s298
      %p302 = scmp.eq.s32.totalorder %s21, 0
      %p303 = por %p301, %p302
      %p304 = scmp.ne.s32.totalorder %s296, %s298
      %p305 = scmp.eq.s32.totalorder %s26, 2
      %p306 = por %p304, %p305
      %p307 = scmp.ne.s32.totalorder %s298, %s299
      %p308 = scmp.eq.s32.totalorder %s26, 0
      %p309 = por %p307, %p308
      %p310 = scmp.ne.s32.totalorder %s298, %s299
      %p311 = scmp.eq.s32.totalorder %s27, 2
      %p312 = por %p310, %p311
      %p314 = scmp.ne.s32.totalorder %s299, %s313
      %p315 = scmp.eq.s32.totalorder %s27, 0
      %p316 = por %p314, %p315
      %s318 = sadd.s32 %s317, 1
      %p321 = scmp.eq.s32.totalorder %s21, 2
      %p322 = scmp.ne.s32.totalorder %s317, %s319
      %p323 = scmp.eq.s32.totalorder %s21, 0
      %p324 = por %p322, %p323
      %p325 = scmp.ne.s32.totalorder %s317, %s319
      %p326 = scmp.eq.s32.totalorder %s26, 2
      %p327 = por %p325, %p326
      %p328 = scmp.ne.s32.totalorder %s319, %s320
      %p329 = scmp.eq.s32.totalorder %s26, 0
      %p330 = por %p328, %p329
      %p331 = scmp.ne.s32.totalorder %s319, %s320
      %p332 = scmp.eq.s32.totalorder %s27, 2
      %p333 = por %p331, %p332
      %p335 = scmp.ne.s32.totalorder %s320, %s334
      %p336 = scmp.eq.s32.totalorder %s27, 0
      %p337 = por %p335, %p336
      %s339 = sadd.s32 %s338, 1
      %p342 = scmp.eq.s32.totalorder %s21, 2
      %p343 = scmp.ne.s32.totalorder %s338, %s340
      %p344 = scmp.eq.s32.totalorder %s21, 0
      %p345 = por %p343, %p344
      %p346 = scmp.ne.s32.totalorder %s338, %s340
      %p347 = scmp.eq.s32.totalorder %s26, 2
      %p348 = por %p346, %p347
      %p349 = scmp.ne.s32.totalorder %s340, %s341
      %p350 = scmp.eq.s32.totalorder %s26, 0
      %p351 = por %p349, %p350
      %p352 = scmp.ne.s32.totalorder %s340, %s341
      %p353 = scmp.eq.s32.totalorder %s27, 2
      %p354 = por %p352, %p353
      %p356 = scmp.ne.s32.totalorder %s341, %s355
      %p357 = scmp.eq.s32.totalorder %s27, 0
      %p358 = por %p356, %p357
      %p359 = scmp.le.s32.totalorder 1, %s21
      %p360 = scmp.lt.s32.totalorder %s21, 4
      %p361 = pnand %p359, %p360
      %p362 = pneg %p361
      // Predicated region
      $region9: #{decoder_rnn_forward.1} parent=5 // pred_check
        _
      $region10: #{decoder_rnn_forward.1} parent=5 // pred_check_branch
        %364 = sbr.rel (%p361) target = $region12
      $region11: #{decoder_rnn_forward.1} parent=5 // pred_region
        %s365 = ssub.s32 %s21, 1
        // Predicated region
        $region13: #{decoder_rnn_forward.1} parent=11 // pred_check
          %p366 = pneg %p42
        $region14: #{decoder_rnn_forward.1} parent=11 // pred_check_branch
          %368 = sbr.rel (%p366) target = $region16
        $region15: #{decoder_rnn_forward.1} parent=11 // pred_region
          _
        $region16: #{decoder_rnn_forward.1} parent=11 // pred_fallthru
          _
        // Predicated region
        $region17: #{decoder_rnn_forward.1} parent=11 // pred_check
          %p369 = pneg %p63
        $region18: #{decoder_rnn_forward.1} parent=11 // pred_check_branch
          %371 = sbr.rel (%p369) target = $region20
        $region19: #{decoder_rnn_forward.1} parent=11 // pred_region
          _
        $region20: #{decoder_rnn_forward.1} parent=11 // pred_fallthru
          _
        // Predicated region
        $region21: #{decoder_rnn_forward.1} parent=11 // pred_check
          %p372 = pneg %p84
        $region22: #{decoder_rnn_forward.1} parent=11 // pred_check_branch
          %374 = sbr.rel (%p372) target = $region24
        $region23: #{decoder_rnn_forward.1} parent=11 // pred_region
          _
        $region24: #{decoder_rnn_forward.1} parent=11 // pred_fallthru
          _
        // Predicated region
        $region25: #{decoder_rnn_forward.1} parent=11 // pred_check
          %p375 = pneg %p105
        $region26: #{decoder_rnn_forward.1} parent=11 // pred_check_branch
          %377 = sbr.rel (%p375) target = $region28
        $region27: #{decoder_rnn_forward.1} parent=11 // pred_region
          _
        $region28: #{decoder_rnn_forward.1} parent=11 // pred_fallthru
          _
        // Predicated region
        $region29: #{decoder_rnn_forward.1} parent=11 // pred_check
          %p378 = pneg %p126
        $region30: #{decoder_rnn_forward.1} parent=11 // pred_check_branch
          %380 = sbr.rel (%p378) target = $region32
        $region31: #{decoder_rnn_forward.1} parent=11 // pred_region
          _
        $region32: #{decoder_rnn_forward.1} parent=11 // pred_fallthru
          _
        // Predicated region
        $region33: #{decoder_rnn_forward.1} parent=11 // pred_check
          %p381 = pneg %p147
        $region34: #{decoder_rnn_forward.1} parent=11 // pred_check_branch
          %383 = sbr.rel (%p381) target = $region36
        $region35: #{decoder_rnn_forward.1} parent=11 // pred_region
          _
        $region36: #{decoder_rnn_forward.1} parent=11 // pred_fallthru
          _
        // Predicated region
        $region37: #{decoder_rnn_forward.1} parent=11 // pred_check
          %p384 = pneg %p168
        $region38: #{decoder_rnn_forward.1} parent=11 // pred_check_branch
          %386 = sbr.rel (%p384) target = $region40
        $region39: #{decoder_rnn_forward.1} parent=11 // pred_region
          _
        $region40: #{decoder_rnn_forward.1} parent=11 // pred_fallthru
          _
        // Predicated region
        $region41: #{decoder_rnn_forward.1} parent=11 // pred_check
          %p387 = pneg %p189
        $region42: #{decoder_rnn_forward.1} parent=11 // pred_check_branch
          %389 = sbr.rel (%p387) target = $region44
        $region43: #{decoder_rnn_forward.1} parent=11 // pred_region
          _
        $region44: #{decoder_rnn_forward.1} parent=11 // pred_fallthru
          _
        // Predicated region
        $region45: #{decoder_rnn_forward.1} parent=11 // pred_check
          %p390 = pneg %p210
        $region46: #{decoder_rnn_forward.1} parent=11 // pred_check_branch
          %392 = sbr.rel (%p390) target = $region48
        $region47: #{decoder_rnn_forward.1} parent=11 // pred_region
          _
        $region48: #{decoder_rnn_forward.1} parent=11 // pred_fallthru
          _
      $region12: #{decoder_rnn_forward.1} parent=5 // pred_fallthru
        _
      %p393 = scmp.lt.s32.totalorder %s21, 3
      // Predicated region
      $region49: #{decoder_rnn_forward.1} parent=5 // pred_check
        %p394 = pneg %p393
      $region50: #{decoder_rnn_forward.1} parent=5 // pred_check_branch
        %396 = sbr.rel (%p394) target = $region52
      $region51: #{decoder_rnn_forward.1} parent=5 // pred_region
        // Predicated region
        $region53: #{decoder_rnn_forward.1} parent=51 // pred_check
          %p397 = pneg %p230
        $region54: #{decoder_rnn_forward.1} parent=51 // pred_check_branch
          %399 = sbr.rel (%p397) target = $region56
        $region55: #{decoder_rnn_forward.1} parent=51 // pred_region
          %s400 = sand.u32 %s220, 1
          %s401 = sand.u32 %s220, 1
          %s402 = smul.addr %s401, 16
          %s403 = scalar_lea.vmem [#allocation5], %s402
          %s404 = smul.addr %s21, 4
          %s405 = scalar_lea.vmem %s9, %s404
          // Predicated region
          $region57: #{decoder_rnn_forward.1} parent=55 // pred_check
            _
          $region58: #{decoder_rnn_forward.1} parent=55 // pred_check_branch
            %407 = sbr.rel (0) target = $region60
          $region59: #{decoder_rnn_forward.1} parent=55 // pred_region
            // Predicated region
            $region61: #{decoder_rnn_forward.1} parent=59 // pred_check
              _
            $region62: #{decoder_rnn_forward.1} parent=59 // pred_check_branch
              %409 = sbr.rel target = $region64
            $region63: #{decoder_rnn_forward.1} parent=59 // pred_region
              // Predicated region
              $region76: #{decoder_rnn_forward.1} parent=63 // pred_check
                _
              $region77: #{decoder_rnn_forward.1} parent=63 // pred_check_branch
                %431 = sbr.rel (0) target = $region79
              $region78: #{decoder_rnn_forward.1} parent=63 // pred_region
                loop: start=0, step=1, limit=1
                $region80: #{decoder_rnn_forward.1} parent=78 // loop_pre_header
                  _
                $region81: #{decoder_rnn_forward.1} parent=78 // loop_header
                  %s433 = sphi 0, %s437
                  %p434 = scmp.ge.s32.totalorder %s433, 1
                  %s438 = sphi %s405, %s405
                  %s439 = sphi %s403, %s403
                $region82: #{decoder_rnn_forward.1} parent=78 // loop_header_branch
                  %436 = sbr.rel (%p434) target = $region86
                $region83: #{decoder_rnn_forward.1} parent=78 // loop_body
                  _
                $region84: #{decoder_rnn_forward.1} parent=78 // loop_footer
                  %s437 = sadd.s32 1, %s433
                $region85: #{decoder_rnn_forward.1} parent=78 // loop_footer_branch
                  %432 = sbr.rel target = $region81
                $region86: #{decoder_rnn_forward.1} parent=78 // loop_exit
                  _
                %s441 = ssub.s32 16, 1
                loop: start=0, step=1, limit=1
                $region87: #{decoder_rnn_forward.1} parent=78 // loop_pre_header
                  _
                $region88: #{decoder_rnn_forward.1} parent=78 // loop_header
                  %s443 = sphi 0, %s447
                  %p444 = scmp.ge.s32.totalorder %s443, 1
                  %s448 = sphi %s405, %s405
                  %s449 = sphi %s403, %s403
                $region89: #{decoder_rnn_forward.1} parent=78 // loop_header_branch
                  %446 = sbr.rel (%p444) target = $region93
                $region90: #{decoder_rnn_forward.1} parent=78 // loop_body
                  %v450 = vld [vmem:[%s448] sm:%s441]
                  %451 = vst [vmem:[%s449] sm:%s441] %v450
                  %v452 = vld [vmem:[%s448 + $0xc] sm:%s441]
                  %453 = vst [vmem:[%s449 + $0x4] sm:%s441] %v452
                  %v454 = vld [vmem:[%s448 + $0x18] sm:%s441]
                  %455 = vst [vmem:[%s449 + $0x8] sm:%s441] %v454
                  %v456 = vld [vmem:[%s448 + $0x24] sm:%s441]
                  %457 = vst [vmem:[%s449 + $0xc] sm:%s441] %v456
                $region91: #{decoder_rnn_forward.1} parent=78 // loop_footer
                  %s447 = sadd.s32 1, %s443
                $region92: #{decoder_rnn_forward.1} parent=78 // loop_footer_branch
                  %442 = sbr.rel target = $region88
                $region93: #{decoder_rnn_forward.1} parent=78 // loop_exit
                  _
              $region79: #{decoder_rnn_forward.1} parent=63 // pred_fallthru
                _
            $region64: #{decoder_rnn_forward.1} parent=59 // pred_fallthru
              _
            // Predicated region
            $region65: #{decoder_rnn_forward.1} parent=59 // pred_check
              _
            $region66: #{decoder_rnn_forward.1} parent=59 // pred_check_branch
              %411 = sbr.rel (0) target = $region68
            $region67: #{decoder_rnn_forward.1} parent=59 // pred_region
              %s413 = ssub.s32 16, 1
              loop: start=0, step=1, limit=1
              $region69: #{decoder_rnn_forward.1} parent=67 // loop_pre_header
                _
              $region70: #{decoder_rnn_forward.1} parent=67 // loop_header
                %s415 = sphi 0, %s419
                %p416 = scmp.ge.s32.totalorder %s415, 1
                %s420 = sphi %s405, %s405
                %s421 = sphi %s403, %s403
              $region71: #{decoder_rnn_forward.1} parent=67 // loop_header_branch
                %418 = sbr.rel (%p416) target = $region75
              $region72: #{decoder_rnn_forward.1} parent=67 // loop_body
                %v422 = vld [vmem:[%s420] sm:%s413]
                %423 = vst [vmem:[%s421] sm:%s413] %v422
                %v424 = vld [vmem:[%s420 + $0xc] sm:%s413]
                %425 = vst [vmem:[%s421 + $0x4] sm:%s413] %v424
                %v426 = vld [vmem:[%s420 + $0x18] sm:%s413]
                %427 = vst [vmem:[%s421 + $0x8] sm:%s413] %v426
                %v428 = vld [vmem:[%s420 + $0x24] sm:%s413]
                %429 = vst [vmem:[%s421 + $0xc] sm:%s413] %v428
              $region73: #{decoder_rnn_forward.1} parent=67 // loop_footer
                %s419 = sadd.s32 1, %s415
              $region74: #{decoder_rnn_forward.1} parent=67 // loop_footer_branch
                %414 = sbr.rel target = $region70
              $region75: #{decoder_rnn_forward.1} parent=67 // loop_exit
                _
            $region68: #{decoder_rnn_forward.1} parent=59 // pred_fallthru
              _
          $region60: #{decoder_rnn_forward.1} parent=55 // pred_fallthru
            _
          %458 = vnop
        $region56: #{decoder_rnn_forward.1} parent=51 // pred_fallthru
          _
        // Predicated region
        $region94: #{decoder_rnn_forward.1} parent=51 // pred_check
          %p459 = pneg %p256
        $region95: #{decoder_rnn_forward.1} parent=51 // pred_check_branch
          %461 = sbr.rel (%p459) target = $region97
        $region96: #{decoder_rnn_forward.1} parent=51 // pred_region
          %p462 = scmp.lt.s32.totalorder %s21, 2
          %s463 = scalar_select %p462, %s21, 2
          %s464 = scalar_lea.vmem %s10, %s463
        $region97: #{decoder_rnn_forward.1} parent=51 // pred_fallthru
          _
      $region52: #{decoder_rnn_forward.1} parent=5 // pred_fallthru
        _
      %p465 = scmp.le.s32.totalorder 1, %s21
      %p466 = scmp.lt.s32.totalorder %s21, 4
      %p467 = pnand %p465, %p466
      %p468 = pneg %p467
      // Predicated region
      $region98: #{decoder_rnn_forward.1} parent=5 // pred_check
        _
      $region99: #{decoder_rnn_forward.1} parent=5 // pred_check_branch
        %470 = sbr.rel (%p467) target = $region101
      $region100: #{decoder_rnn_forward.1} parent=5 // pred_region
        %s471 = ssub.s32 %s21, 1
        %s472 = sand.u32 %s223, 1
        %s473 = sand.u32 %s223, 1
        %s474 = smul.addr %s473, 16
        %s475 = scalar_lea.vmem [#allocation5], %s474
        // Predicated region
        $region102: #{decoder_rnn_forward.1} parent=100 // pred_check
          %p476 = pneg %p236
        $region103: #{decoder_rnn_forward.1} parent=100 // pred_check_branch
          %478 = sbr.rel (%p476) target = $region105
        $region104: #{decoder_rnn_forward.1} parent=100 // pred_region
          _
        $region105: #{decoder_rnn_forward.1} parent=100 // pred_fallthru
          _
        %p479 = pneg %p42
        %p480 = pneg %p39
        %p481 = pneg %p63
        %p482 = pneg %p60
        %p483 = pneg %p84
        %p484 = pneg %p81
        %p485 = pneg %p105
        %p486 = pneg %p102
        %p487 = pneg %p126
        %p488 = pneg %p123
        %p489 = pneg %p147
        %p490 = pneg %p144
        %p491 = pneg %p168
        %p492 = pneg %p165
        %p493 = pneg %p189
        %p494 = pneg %p186
        %p495 = pneg %p210
        %p496 = pneg %p207
        %s497 = sand.u32 %s223, 1
        %s498 = sand.u32 %s223, 1
        %s499 = smul.addr %s498, 16
        %s500 = scalar_lea.vmem [#allocation5], %s499
        %p501 = pneg %p236
        %p502 = pneg %p233
        %p503 = scmp.lt.s32.totalorder %s26, 2
        %s504 = scalar_select %p503, %s26, 2
        %s505 = scalar_lea.vmem %s10, %s504
        %p506 = pneg %p262
        %p507 = pneg %p259
        %p508 = pneg %p288
        %p509 = pneg %p285
        %p510 = scmp.lt.s32.totalorder %s26, 2
        %s511 = scalar_select %p510, %s26, 2
        %s512 = smul.addr %s511, 2
        %s513 = scalar_lea.vmem %s11, %s512
        %p514 = pneg %p309
        %p515 = pneg %p306
        %p516 = pneg %p330
        %p517 = pneg %p327
        %p518 = pneg %p351
        %p519 = pneg %p348
        %p520 = scmp.lt.s32.totalorder %s26, 2
        %s521 = scalar_select %p520, %s26, 2
        %s522 = scalar_lea.vmem %s10, %s521
        %p523 = scmp.lt.s32.totalorder %s26, 2
        %s524 = scalar_select %p523, %s26, 2
        %s525 = smul.addr %s524, 2
        %s526 = scalar_lea.vmem %s11, %s525
        %p528 = scmp.eq.s32.totalorder %s26, 0
        // Predicated region
        $region106: #{decoder_rnn_forward.1} parent=100 // pred_check
          %p529 = pneg %p528
        $region107: #{decoder_rnn_forward.1} parent=100 // pred_check_branch
          %531 = sbr.rel (%p529) target = $region109
        $region108: #{decoder_rnn_forward.1} parent=100 // pred_region
          %v532 = vld [vmem:[%s0] sm:$0x3]
          %v533 = vpack.c.bf16 %v532, %v532
          %v534 = vld [vmem:[%s1] sm:$0x3]
          %v535 = vpack.c.bf16 %v534, %v534
          %v536 = vld [vmem:[%s2] sm:$0x3]
          %v537 = vld [vmem:[%s3] sm:$0x3]
          %v538 = vld [vmem:[%s4] sm:$0xf]
          %v539 = vld [vmem:[%s4 + $0x4] sm:$0xf]
          %v540 = vld [vmem:[%s4 + $0x8] sm:$0xf]
          %v541 = vld [vmem:[%s4 + $0xc] sm:$0xf]
          %v542 = vld [vmem:[%s5] sm:$0xf]
          %v543 = vld [vmem:[%s5 + $0x4] sm:$0xf]
          %v544 = vld [vmem:[%s5 + $0x8] sm:$0xf]
          %v545 = vld [vmem:[%s5 + $0xc] sm:$0xf]
          %v546 = vld [vmem:[%s5 + $0x10] sm:$0xf]
          %v547 = vld [vmem:[%s5 + $0x14] sm:$0xf]
          %v548 = vld [vmem:[%s5 + $0x18] sm:$0xf]
          %v549 = vld [vmem:[%s5 + $0x1c] sm:$0xf]
          %v558 = vunpack.c.l.b16 %v542
          %v559 = vunpack.c.l.b16 %v543
          %v560 = vunpack.c.l.b16 %v544
          %v561 = vunpack.c.l.b16 %v545
          %v562 = vunpack.c.l.b16 %v546
          %v563 = vunpack.c.l.b16 %v547
          %v564 = vunpack.c.l.b16 %v548
          %v565 = vunpack.c.l.b16 %v549
          %v566 = vpack.c.b16 %v559, %v558
          %v567 = vpack.c.b16 %v561, %v560
          %v568 = vpack.c.b16 %v563, %v562
          %v569 = vpack.c.b16 %v565, %v564
          %vm574 = vcmask 523264
          %v576 = vsel %vm574, %v535, 0
          %578 = vmatpush.bf16.msra.mxu0 0
          %579 = vmatpush.bf16.msra.mxu0 0
          %580 = vmatpush.bf16.msra.mxu0 0
          %581 = vmatpush.bf16.msra.mxu0 0
          %582 = vmatpush.bf16.msra.mxu0 %v569
          %583 = vmatpush.bf16.msra.mxu0 %v568
          %584 = vmatpush.bf16.msra.mxu0 %v567
          %585 = vmatpush.bf16.msra.mxu0 %v566
          %586 = vmatmul.bf16.gmra.mxu0 %v576
          %v587 = vpop.f32.mrf.mxu0
          %v588 = vadd.f32 0.0, %v587
          %v589 = vpop.f32.mrf.mxu0
          %590 = vdwg.mxu0
          %v595 = vunpack.c.l.b16 %v538
          %v596 = vunpack.c.l.b16 %v539
          %v597 = vunpack.c.l.b16 %v540
          %v598 = vunpack.c.l.b16 %v541
          %v599 = vpack.c.b16 %v596, %v595
          %v600 = vpack.c.b16 %v598, %v597
          %vm603 = vcmask 261120
          %v605 = vsel %vm603, %v533, 0
          %607 = vmatpush.bf16.msra.mxu0 0
          %608 = vmatpush.bf16.msra.mxu0 0
          %609 = vmatpush.bf16.msra.mxu0 0
          %610 = vmatpush.bf16.msra.mxu0 0
          %611 = vmatpush.bf16.msra.mxu0 0
          %612 = vmatpush.bf16.msra.mxu0 0
          %613 = vmatpush.bf16.msra.mxu0 %v600
          %614 = vmatpush.bf16.msra.mxu0 %v599
          %615 = vmatmul.bf16.gmra.mxu0 %v605
          %v616 = vpop.f32.mrf.mxu0
          %v617 = vadd.f32 %v588, %v616
          %v618 = vpop.f32.mrf.mxu0
          %619 = vdwg.mxu0
          %v620 = vpack.c.bf16 %v536, %v536
          %v621 = vld [vmem:[%s7] sm:$0xf]
          %v622 = vld [vmem:[%s7 + $0x4] sm:$0xf]
          %v623 = vld [vmem:[%s7 + $0x8] sm:$0xf]
          %v624 = vld [vmem:[%s7 + $0xc] sm:$0xf]
          %v629 = vunpack.c.l.b16 %v621
          %v630 = vunpack.c.l.b16 %v622
          %v631 = vunpack.c.l.b16 %v623
          %v632 = vunpack.c.l.b16 %v624
          %v633 = vpack.c.b16 %v630, %v629
          %v634 = vpack.c.b16 %v632, %v631
          %v638 = vsel %vm603, %v620, 0
          %640 = vmatpush.bf16.msra.mxu0 0
          %641 = vmatpush.bf16.msra.mxu0 0
          %642 = vmatpush.bf16.msra.mxu0 0
          %643 = vmatpush.bf16.msra.mxu0 0
          %644 = vmatpush.bf16.msra.mxu0 0
          %645 = vmatpush.bf16.msra.mxu0 0
          %646 = vmatpush.bf16.msra.mxu0 %v634
          %647 = vmatpush.bf16.msra.mxu0 %v633
          %648 = vmatmul.bf16.gmra.mxu0 %v638
          %v649 = vpop.f32.mrf.mxu0
          %v650 = vadd.f32 0.0, %v649
          %v651 = vpop.f32.mrf.mxu0
          %652 = vdwg.mxu0
          %v653 = vadd.f32 %v617, %v650
          %v654 = vld [vmem:[%s8] sm:$0x1]
          %v655 = vperm.slane %v654, 0
          %v656 = vadd.f32 %v653, %v655
          %v657 = vxor.u32 %v656, 2147483648
          %v658 = vmul.f32 %v657, 1.442695
          %v659 = vpow.pop %v658
          %v660 = vadd.f32 %v659, 1.0
          %v661 = vrcp.pop %v660
          %v662 = vmul.f32 %v660, %v661
          %v663 = vsub.f32 1.0, %v662
          %v664 = vmul.f32 %v661, %v663
          %v665 = vadd.f32 %v661, %v664
          %vm666 = vweird.f32 %v660
          %vm667 = vweird.f32 %v661
          %vm668 = vmor %vm666, %vm667
          %v669 = vsel %vm668, %v661, %v665
          %v670 = vand.u32 2147483647, %v660
          %vm671 = vcmp.eq.f32.partialorder %v670, 8.507059e+37
          %v672 = vand.u32 %v660, 2147483648
          %v673 = vor.u32 1.1754944e-38, %v672
          %v674 = vsel %vm671, %v673, %v669
          %v675 = vmul.f32 1.0, %v674
          %v676 = vtanh.pop %v656
          %678 = vrot.lane.b32.xlu0 %v537, 32
          %v679 = vpop.permute.xlu0 %678
          %v681 = vmul.f32 %v675, %v679
          %683 = vrot.lane.b32.xlu0 %v676, 32
          %v684 = vpop.permute.xlu0 %683
          %v686 = vmul.f32 %v675, %v684
          %688 = vrot.lane.b32.xlu0 %v686, 32
          %v689 = vpop.permute.xlu0 %688
          %v691 = vadd.f32 %v681, %v689
          %v692 = vtanh.pop %v691
          %694 = vrot.lane.b32.xlu0 %v692, 32
          %v695 = vpop.permute.xlu0 %694
          %v697 = vmul.f32 %v675, %v695
          %699 = vrot.lane.b32.xlu0 %v697, 64
          %v700 = vpop.permute.xlu0 %699
          %vm702 = vcmask 254976
          %703 = vst.msk [vmem:[%s13] sm:$0x3] %vm702, %v700
          %705 = vrot.lane.b32.xlu0 %v691, 96
          %v706 = vpop.permute.xlu0 %705
          %708 = vst.msk [vmem:[%s14] sm:$0x3] %vm702, %v706
          %v709 = vpack.c.bf16 %v697, %v697
          %s710 = scalar_lea.vmem %s2, 2
          %v711 = vld [vmem:[%s710] sm:$0x3]
          %s712 = scalar_lea.vmem %s3, 2
          %v713 = vld [vmem:[%s712] sm:$0x3]
          %v714 = vld [vmem:[%s6] sm:$0xf]
          %v715 = vld [vmem:[%s6 + $0x4] sm:$0xf]
          %v716 = vld [vmem:[%s6 + $0x8] sm:$0xf]
          %v717 = vld [vmem:[%s6 + $0xc] sm:$0xf]
          %v718 = vpack.c.bf16 %v711, %v711
          %s719 = scalar_lea.vmem %s7, 16
          %v720 = vld [vmem:[%s719] sm:$0xf]
          %v721 = vld [vmem:[%s719 + $0x4] sm:$0xf]
          %v722 = vld [vmem:[%s719 + $0x8] sm:$0xf]
          %v723 = vld [vmem:[%s719 + $0xc] sm:$0xf]
          %v728 = vunpack.c.l.b16 %v720
          %v729 = vunpack.c.l.b16 %v721
          %v730 = vunpack.c.l.b16 %v722
          %v731 = vunpack.c.l.b16 %v723
          %v732 = vpack.c.b16 %v729, %v728
          %v733 = vpack.c.b16 %v731, %v730
          %v737 = vsel %vm603, %v718, 0
          %739 = vmatpush.bf16.msra.mxu0 0
          %740 = vmatpush.bf16.msra.mxu0 0
          %741 = vmatpush.bf16.msra.mxu0 0
          %742 = vmatpush.bf16.msra.mxu0 0
          %743 = vmatpush.bf16.msra.mxu0 0
          %744 = vmatpush.bf16.msra.mxu0 0
          %745 = vmatpush.bf16.msra.mxu0 %v733
          %746 = vmatpush.bf16.msra.mxu0 %v732
          %747 = vmatmul.bf16.gmra.mxu0 %v737
          %v748 = vpop.f32.mrf.mxu0
          %v749 = vadd.f32 0.0, %v748
          %v750 = vpop.f32.mrf.mxu0
          %751 = vdwg.mxu0
          %753 = vrot.lane.b32.xlu0 %v709, 64
          %v754 = vpop.permute.xlu0 %753
          %v759 = vunpack.c.l.b16 %v714
          %v760 = vunpack.c.l.b16 %v715
          %v761 = vunpack.c.l.b16 %v716
          %v762 = vunpack.c.l.b16 %v717
          %v763 = vpack.c.b16 %v760, %v759
          %v764 = vpack.c.b16 %v762, %v761
          %v768 = vsel %vm603, %v754, 0
          %770 = vmatpush.bf16.msra.mxu0 0
          %771 = vmatpush.bf16.msra.mxu0 0
          %772 = vmatpush.bf16.msra.mxu0 0
          %773 = vmatpush.bf16.msra.mxu0 0
          %774 = vmatpush.bf16.msra.mxu0 0
          %775 = vmatpush.bf16.msra.mxu0 0
          %776 = vmatpush.bf16.msra.mxu0 %v764
          %777 = vmatpush.bf16.msra.mxu0 %v763
          %778 = vmatmul.bf16.gmra.mxu0 %v768
          %v779 = vpop.f32.mrf.mxu0
          %v780 = vadd.f32 %v749, %v779
          %v781 = vpop.f32.mrf.mxu0
          %782 = vdwg.mxu0
          %v783 = vld [vmem:[%s8 + $0x1] sm:$0x1]
          %v784 = vperm.slane %v783, 0
          %v785 = vadd.f32 %v780, %v784
          %v786 = vxor.u32 %v785, 2147483648
          %v787 = vmul.f32 %v786, 1.442695
          %v788 = vpow.pop %v787
          %v789 = vadd.f32 %v788, 1.0
          %v790 = vrcp.pop %v789
          %v791 = vmul.f32 %v789, %v790
          %v792 = vsub.f32 1.0, %v791
          %v793 = vmul.f32 %v790, %v792
          %v794 = vadd.f32 %v790, %v793
          %vm795 = vweird.f32 %v789
          %vm796 = vweird.f32 %v790
          %vm797 = vmor %vm795, %vm796
          %v798 = vsel %vm797, %v790, %v794
          %v799 = vand.u32 2147483647, %v789
          %vm800 = vcmp.eq.f32.partialorder %v799, 8.507059e+37
          %v801 = vand.u32 %v789, 2147483648
          %v802 = vor.u32 1.1754944e-38, %v801
          %v803 = vsel %vm800, %v802, %v798
          %v804 = vmul.f32 1.0, %v803
          %v805 = vtanh.pop %v785
          %807 = vrot.lane.b32.xlu0 %v713, 32
          %v808 = vpop.permute.xlu0 %807
          %v810 = vmul.f32 %v804, %v808
          %812 = vrot.lane.b32.xlu0 %v805, 32
          %v813 = vpop.permute.xlu0 %812
          %v815 = vmul.f32 %v804, %v813
          %817 = vrot.lane.b32.xlu0 %v815, 32
          %v818 = vpop.permute.xlu0 %817
          %v820 = vadd.f32 %v810, %v818
          %v821 = vtanh.pop %v820
          %823 = vrot.lane.b32.xlu0 %v821, 32
          %v824 = vpop.permute.xlu0 %823
          %v826 = vmul.f32 %v804, %v824
          %828 = vrot.lane.b32.xlu0 %v826, 64
          %v829 = vpop.permute.xlu0 %828
          %s831 = scalar_lea.vmem %s13, 2
          %832 = vst.msk [vmem:[%s831] sm:$0x3] %vm702, %v829
          %834 = vrot.lane.b32.xlu0 %v820, 96
          %v835 = vpop.permute.xlu0 %834
          %s837 = scalar_lea.vmem %s14, 2
          %838 = vst.msk [vmem:[%s837] sm:$0x3] %vm702, %v835
          %v839 = vpack.c.bf16 %v826, %v826
          %v841 = vrot.slane %v839, 3
          %vm842 = vcmask 1040384
          %v845 = vsel %vm842, %v839, %v841
          %847 = vrot.lane.b32.xlu0 %v845, 64
          %v848 = vpop.permute.xlu0 %847
          %vm850 = vcmask 253952
          %851 = vst.msk [vmem:[#allocation2] sm:$0x1] %vm850, %v848
          %vm852 = vcmask 1024
          %853 = vst.msk [vmem:[#allocation3] sm:$0x3] %vm852, -1e+30
          %854 = vst.msk [vmem:[#allocation4] sm:$0x3] %vm852, 0.0
        $region109: #{decoder_rnn_forward.1} parent=100 // pred_fallthru
          _
        %v855 = vld [vmem:[#allocation2] sm:$0x1]
        %v856 = vld [vmem:[%s475] sm:$0xf]
        %v857 = vld [vmem:[%s475 + $0x4] sm:$0xf]
        %v858 = vld [vmem:[%s475 + $0x8] sm:$0xf]
        %v859 = vld [vmem:[%s475 + $0xc] sm:$0xf]
        %v860 = vld [vmem:[%s522] sm:$0x1]
        %v862 = vperm.slane %v860, 0
        %v868 = vunpack.c.l.b16 %v856
        %v869 = vunpack.c.l.b16 %v857
        %v870 = vunpack.c.l.b16 %v858
        %v871 = vunpack.c.l.b16 %v859
        %v872 = vpack.c.b16 %v869, %v868
        %v873 = vpack.c.b16 %v871, %v870
        %vm876 = vcmask 261120
        %v878 = vsel %vm876, %v855, 0
        %880 = vmatpush.bf16.msra.mxu0 0
        %881 = vmatpush.bf16.msra.mxu0 0
        %882 = vmatpush.bf16.msra.mxu0 0
        %883 = vmatpush.bf16.msra.mxu0 0
        %884 = vmatpush.bf16.msra.mxu0 0
        %885 = vmatpush.bf16.msra.mxu0 0
        %886 = vmatpush.bf16.msra.mxu0 %v873
        %887 = vmatpush.bf16.msra.mxu0 %v872
        %888 = vmatmul.bf16.gmra.mxu0 %v878
        %v889 = vpop.f32.mrf.mxu0
        %v890 = vadd.f32 %v862, %v889
        %v891 = vpop.f32.mrf.mxu0
        %892 = vdwg.mxu0
        %893 = vst [vmem:[%s526] sm:$0x3] %v890
        %v894 = vld [vmem:[#allocation3] sm:$0x3]
        %vm895 = vcmask 1041408
        %v896 = vsel %vm895, %v890, -inf
        %897 = vmax.xlane.f32.xlu0 %v896
        %v898 = vpop.xlane.xlu0 %897
        %v899 = vmax.f32 %v894, %v898
        %v900 = vld [vmem:[#allocation4] sm:$0x3]
        %v901 = vsub.f32 %v894, %v899
        %v902 = vmul.f32 %v901, 1.442695
        %v903 = vpow.pop %v902
        %v904 = vmul.f32 %v900, %v903
        %906 = vset.pattern.permute.xlu0 0
        %907 = vperm.xlu0 %906, %v899
        %v908 = vpop.permute.xlu0 %907
        %v910 = vsub.f32 %v890, %v908
        %v911 = vmul.f32 %v910, 1.442695
        %v912 = vpow.pop %v911
        %v913 = vsel %vm895, %v912, 0.0
        %914 = vadd.xlane.f32.xlu0 %v913
        %v915 = vpop.xlane.xlu0 %914
        %v916 = vadd.f32 %v904, %v915
        %vm917 = vcmask 1024
        %918 = vst.msk [vmem:[#allocation4] sm:$0x3] %vm917, %v916
        %919 = vst.msk [vmem:[#allocation3] sm:$0x3] %vm917, %v899
        %p920 = scmp.eq.s32.totalorder %s26, 2
        // Predicated region
        $region110: #{decoder_rnn_forward.1} parent=100 // pred_check
          %p921 = pneg %p920
        $region111: #{decoder_rnn_forward.1} parent=100 // pred_check_branch
          %923 = sbr.rel (%p921) target = $region113
        $region112: #{decoder_rnn_forward.1} parent=100 // pred_region
          %v924 = vld [vmem:[#allocation3] sm:$0x3]
          %v925 = vld [vmem:[#allocation4] sm:$0x3]
          %v926 = vlog2.pop %v925
          %v927 = vmul.f32 %v926, 0.6931472
          %v928 = vadd.f32 %v924, %v927
          %929 = vst.msk [vmem:[%s12] sm:$0x3] %vm917, %v928
        $region113: #{decoder_rnn_forward.1} parent=100 // pred_fallthru
          _
        %p930 = scmp.lt.s32.totalorder %s26, 2
        %s931 = scalar_select %p930, %s26, 2
        %s932 = smul.addr %s931, 2
        %s933 = scalar_lea.vmem %s11, %s932
        // Predicated region
        $region114: #{decoder_rnn_forward.1} parent=100 // pred_check
          %p934 = pneg %p285
        $region115: #{decoder_rnn_forward.1} parent=100 // pred_check_branch
          %936 = sbr.rel (%p934) target = $region117
        $region116: #{decoder_rnn_forward.1} parent=100 // pred_region
          _
        $region117: #{decoder_rnn_forward.1} parent=100 // pred_fallthru
          _
        // Predicated region
        $region118: #{decoder_rnn_forward.1} parent=100 // pred_check
          %p937 = pneg %p306
        $region119: #{decoder_rnn_forward.1} parent=100 // pred_check_branch
          %939 = sbr.rel (%p937) target = $region121
        $region120: #{decoder_rnn_forward.1} parent=100 // pred_region
          _
        $region121: #{decoder_rnn_forward.1} parent=100 // pred_fallthru
          _
        // Predicated region
        $region122: #{decoder_rnn_forward.1} parent=100 // pred_check
          %p940 = pneg %p327
        $region123: #{decoder_rnn_forward.1} parent=100 // pred_check_branch
          %942 = sbr.rel (%p940) target = $region125
        $region124: #{decoder_rnn_forward.1} parent=100 // pred_region
          _
        $region125: #{decoder_rnn_forward.1} parent=100 // pred_fallthru
          _
        // Predicated region
        $region126: #{decoder_rnn_forward.1} parent=100 // pred_check
          %p943 = pneg %p348
        $region127: #{decoder_rnn_forward.1} parent=100 // pred_check_branch
          %945 = sbr.rel (%p943) target = $region129
        $region128: #{decoder_rnn_forward.1} parent=100 // pred_region
          _
        $region129: #{decoder_rnn_forward.1} parent=100 // pred_fallthru
          _
        // Predicated region
        $region130: #{decoder_rnn_forward.1} parent=100 // pred_check
          %p946 = pneg %p306
        $region131: #{decoder_rnn_forward.1} parent=100 // pred_check_branch
          %948 = sbr.rel (%p946) target = $region133
        $region132: #{decoder_rnn_forward.1} parent=100 // pred_region
          _
        $region133: #{decoder_rnn_forward.1} parent=100 // pred_fallthru
          _
        // Predicated region
        $region134: #{decoder_rnn_forward.1} parent=100 // pred_check
          %p949 = pneg %p327
        $region135: #{decoder_rnn_forward.1} parent=100 // pred_check_branch
          %951 = sbr.rel (%p949) target = $region137
        $region136: #{decoder_rnn_forward.1} parent=100 // pred_region
          _
        $region137: #{decoder_rnn_forward.1} parent=100 // pred_fallthru
          _
        // Predicated region
        $region138: #{decoder_rnn_forward.1} parent=100 // pred_check
          %p952 = pneg %p348
        $region139: #{decoder_rnn_forward.1} parent=100 // pred_check_branch
          %954 = sbr.rel (%p952) target = $region141
        $region140: #{decoder_rnn_forward.1} parent=100 // pred_region
          _
        $region141: #{decoder_rnn_forward.1} parent=100 // pred_fallthru
          _
      $region101: #{decoder_rnn_forward.1} parent=5 // pred_fallthru
        _
      %p955 = scmp.le.s32.totalorder 2, %s21
      // Predicated region
      $region142: #{decoder_rnn_forward.1} parent=5 // pred_check
        %p956 = pneg %p955
      $region143: #{decoder_rnn_forward.1} parent=5 // pred_check_branch
        %958 = sbr.rel (%p956) target = $region145
      $region144: #{decoder_rnn_forward.1} parent=5 // pred_region
        %s959 = ssub.s32 %s21, 2
        // Predicated region
        $region146: #{decoder_rnn_forward.1} parent=144 // pred_check
          %p960 = pneg %p291
        $region147: #{decoder_rnn_forward.1} parent=144 // pred_check_branch
          %962 = sbr.rel (%p960) target = $region149
        $region148: #{decoder_rnn_forward.1} parent=144 // pred_region
          %p963 = scmp.lt.s32.totalorder %s27, 2
          %s964 = scalar_select %p963, %s27, 2
          %s965 = smul.addr %s964, 2
          %s966 = scalar_lea.vmem %s11, %s965
        $region149: #{decoder_rnn_forward.1} parent=144 // pred_fallthru
          _
      $region145: #{decoder_rnn_forward.1} parent=5 // pred_fallthru
        _
    $region6: #{decoder_rnn_forward.1} parent=1 // loop_footer
      %s25 = sadd.s32 1, %s21
    $region7: #{decoder_rnn_forward.1} parent=1 // loop_footer_branch
      %20 = sbr.rel target = $region3
    $region8: #{decoder_rnn_forward.1} parent=1 // loop_exit
      _

</llo_original>
